<compile_context>
chip_gen: v5e
topology: v5e:2x2
jax: 0.10.0
libtpu: 0.0.40
codegen_flags: <defaults>
</compile_context>

<pallas_src>
import math

import jax
import jax.numpy as jnp
from jax import lax
from jax.experimental import pallas as pl
from jax.experimental.pallas import tpu as pltpu

D_MODEL = 128
HEADS = 4
D_K = D_MODEL // HEADS
SEQ = 8
BATCH = 2


def _mha_kernel(q_ref, k_ref, v_ref,
                wq_ref, bq_ref, wk_ref, bk_ref, wv_ref, bv_ref, wo_ref, bo_ref,
                out_ref, scores_ref):
    q_in = q_ref[0]                      # (SEQ, D_MODEL)
    k_in = k_ref[0]
    v_in = v_ref[0]

    # Input projections (MXU, f32 accumulate), weights resident in VMEM.
    qp = jnp.dot(q_in, wq_ref[...], preferred_element_type=jnp.float32) + bq_ref[...]
    kp = jnp.dot(k_in, wk_ref[...], preferred_element_type=jnp.float32) + bk_ref[...]
    vp = jnp.dot(v_in, wv_ref[...], preferred_element_type=jnp.float32) + bv_ref[...]

    inv_sqrt_dk = 1.0 / math.sqrt(D_K)

    head_outs = []
    for h in range(HEADS):               # static unroll over heads
        lo = h * D_K
        qh = qp[:, lo:lo + D_K]           # (SEQ, D_K)
        kh = kp[:, lo:lo + D_K]
        vh = vp[:, lo:lo + D_K]

        # scores_h = qh @ kh^T / sqrt(d_k)   (contract the d_k axis directly)
        s = lax.dot_general(qh, kh, (((1,), (1,)), ((), ())),
                            preferred_element_type=jnp.float32) * inv_sqrt_dk
        s = s - jnp.max(s, axis=-1, keepdims=True)            # stable softmax
        e = jnp.exp(s)
        p = e / jnp.sum(e, axis=-1, keepdims=True)

        scores_ref[0, h] = p
        head_outs.append(jnp.dot(p, vh, preferred_element_type=jnp.float32))

    concat = jnp.concatenate(head_outs, axis=-1)               # (SEQ, D_MODEL)
    out = jnp.dot(concat, wo_ref[...], preferred_element_type=jnp.float32) + bo_ref[...]
    out_ref[0] = out.astype(out_ref.dtype)


def mha_forward(q, k, v, params):
    B, S, D = q.shape
    assert D == D_MODEL

    x_spec = pl.BlockSpec((1, S, D), lambda b: (b, 0, 0))
    w_spec = pl.BlockSpec((D, D), lambda b: (0, 0))            # grid-invariant: resident
    b_spec = pl.BlockSpec((1, D), lambda b: (0, 0))
    out_spec = pl.BlockSpec((1, S, D), lambda b: (b, 0, 0))
    sc_spec = pl.BlockSpec((1, HEADS, S, S), lambda b: (b, 0, 0, 0))

    out, scores = pl.pallas_call(
        _mha_kernel,
        out_shape=(jax.ShapeDtypeStruct((B, S, D), jnp.float32),
                   jax.ShapeDtypeStruct((B, HEADS, S, S), jnp.float32)),
        grid_spec=pltpu.PrefetchScalarGridSpec(
            num_scalar_prefetch=0,
            grid=(B,),
            in_specs=[x_spec, x_spec, x_spec,
                      w_spec, b_spec, w_spec, b_spec,
                      w_spec, b_spec, w_spec, b_spec],
            out_specs=(out_spec, sc_spec),
        ),
        compiler_params=pltpu.CompilerParams(
            dimension_semantics=("parallel",)),
    )(q, k, v,
      params["wq"], params["bq"], params["wk"], params["bk"],
      params["wv"], params["bv"], params["wo"], params["bo"])
    return out, scores


# ----------------------- parameter construction -----------------------------

def _init_params(key):
    """PyTorch-default-style Linear init; weights stored input-major (in, out)."""
    ks = jax.random.split(key, 8)
    bound = 1.0 / math.sqrt(D_MODEL)

    def lin(kw, kb):
        w = jax.random.uniform(kw, (D_MODEL, D_MODEL), jnp.float32, -bound, bound)
        b = jax.random.uniform(kb, (1, D_MODEL), jnp.float32, -bound, bound)
        return w, b

    wq, bq = lin(ks[0], ks[1])
    wk, bk = lin(ks[2], ks[3])
    wv, bv = lin(ks[4], ks[5])
    wo, bo = lin(ks[6], ks[7])
    return dict(wq=wq, bq=bq, wk=wk, bk=bk, wv=wv, bv=bv, wo=wo, bo=bo)


# ----------------------- pure-JAX reference ----------------------------------

def mha_reference(q, k, v, params):
    B, S, D = q.shape
    hp = lax.Precision.HIGHEST

    def lin(x, w, b):
        return jnp.dot(x, w, precision=hp) + b[0]

    qp = lin(q, params["wq"], params["bq"])
    kp = lin(k, params["wk"], params["bk"])
    vp = lin(v, params["wv"], params["bv"])

    def split(x):
        return x.reshape(B, S, HEADS, D_K).transpose(0, 2, 1, 3)

    qh, kh, vh = split(qp), split(kp), split(vp)
    s = jnp.einsum("bhqd,bhkd->bhqk", qh, kh, precision=hp) / math.sqrt(D_K)
    p = jax.nn.softmax(s, axis=-1)
    o = jnp.einsum("bhqk,bhkd->bhqd", p, vh, precision=hp)
    concat = o.transpose(0, 2, 1, 3).reshape(B, S, D)
    out = lin(concat, params["wo"], params["bo"])
    return out, p


# --------------------------------- main ---------------------------------------

if __name__ == "__main__":
    key = jax.random.PRNGKey(0)
    kq, kk, kv, kparams = jax.random.split(key, 4)

    q = jax.random.normal(kq, (BATCH, SEQ, D_MODEL), jnp.float32)
    k = jax.random.normal(kk, (BATCH, SEQ, D_MODEL), jnp.float32)
    v = jax.random.normal(kv, (BATCH, SEQ, D_MODEL), jnp.float32)
    params = _init_params(kparams)

    out, scores = jax.block_until_ready(mha_forward(q, k, v, params))

    ref_out, ref_scores = mha_reference(q, k, v, params)
    assert out.shape == (BATCH, SEQ, D_MODEL)
    assert scores.shape == (BATCH, HEADS, SEQ, SEQ)
    err_o = float(jnp.max(jnp.abs(out - ref_out)))
    err_s = float(jnp.max(jnp.abs(scores - ref_scores)))
    assert err_o < 1e-3 and err_s < 1e-3, f"max abs err out={err_o} scores={err_s}"

    print("KERNEL_OK")
</pallas_src>

<mosaic_0001>
module attributes {stable_mosaic.version = 11 : i64} {
  func.func @_mha_kernel(%arg0: i32, %arg1: memref<1x8x128xf32, #tpu.memory_space<vmem>>, %arg2: memref<1x8x128xf32, #tpu.memory_space<vmem>>, %arg3: memref<1x8x128xf32, #tpu.memory_space<vmem>>, %arg4: memref<128x128xf32, #tpu.memory_space<vmem>>, %arg5: memref<1x128xf32, #tpu.memory_space<vmem>>, %arg6: memref<128x128xf32, #tpu.memory_space<vmem>>, %arg7: memref<1x128xf32, #tpu.memory_space<vmem>>, %arg8: memref<128x128xf32, #tpu.memory_space<vmem>>, %arg9: memref<1x128xf32, #tpu.memory_space<vmem>>, %arg10: memref<128x128xf32, #tpu.memory_space<vmem>>, %arg11: memref<1x128xf32, #tpu.memory_space<vmem>>, %arg12: memref<1x8x128xf32, #tpu.memory_space<vmem>>, %arg13: memref<1x4x8x8xf32, #tpu.memory_space<vmem>>) attributes {dimension_semantics = [#tpu.dimension_semantics<parallel>], iteration_bounds = array<i64: 2>, scalar_prefetch = 0 : i64, scratch_operands = 0 : i64, tpu.core_type = #tpu.core_type<tc>, window_params = [{transform_indices = @transform_0, window_bounds = array<i64: 1, 8, 128>}, {transform_indices = @transform_1, window_bounds = array<i64: 1, 8, 128>}, {transform_indices = @transform_2, window_bounds = array<i64: 1, 8, 128>}, {pipeline_mode = #tpu.pipeline_mode<synchronous>, transform_indices = @transform_3, window_bounds = array<i64: 128, 128>}, {pipeline_mode = #tpu.pipeline_mode<synchronous>, transform_indices = @transform_4, window_bounds = array<i64: 1, 128>}, {pipeline_mode = #tpu.pipeline_mode<synchronous>, transform_indices = @transform_5, window_bounds = array<i64: 128, 128>}, {pipeline_mode = #tpu.pipeline_mode<synchronous>, transform_indices = @transform_6, window_bounds = array<i64: 1, 128>}, {pipeline_mode = #tpu.pipeline_mode<synchronous>, transform_indices = @transform_7, window_bounds = array<i64: 128, 128>}, {pipeline_mode = #tpu.pipeline_mode<synchronous>, transform_indices = @transform_8, window_bounds = array<i64: 1, 128>}, {pipeline_mode = #tpu.pipeline_mode<synchronous>, transform_indices = @transform_9, window_bounds = array<i64: 128, 128>}, {pipeline_mode = #tpu.pipeline_mode<synchronous>, transform_indices = @transform_10, window_bounds = array<i64: 1, 128>}, {transform_indices = @transform_11, window_bounds = array<i64: 1, 8, 128>}, {transform_indices = @transform_12, window_bounds = array<i64: 1, 4, 8, 8>}]} {
    %c0 = arith.constant 0 : index
    %c0_0 = arith.constant 0 : index
    %c0_1 = arith.constant 0 : index
    %0 = vector.load %arg1[%c0, %c0_0, %c0_1] : memref<1x8x128xf32, #tpu.memory_space<vmem>>, vector<1x8x128xf32>
    %1 = vector.shape_cast %0 : vector<1x8x128xf32> to vector<8x128xf32>
    %c0_2 = arith.constant 0 : index
    %c0_3 = arith.constant 0 : index
    %c0_4 = arith.constant 0 : index
    %2 = vector.load %arg2[%c0_2, %c0_3, %c0_4] : memref<1x8x128xf32, #tpu.memory_space<vmem>>, vector<1x8x128xf32>
    %3 = vector.shape_cast %2 : vector<1x8x128xf32> to vector<8x128xf32>
    %c0_5 = arith.constant 0 : index
    %c0_6 = arith.constant 0 : index
    %c0_7 = arith.constant 0 : index
    %4 = vector.load %arg3[%c0_5, %c0_6, %c0_7] : memref<1x8x128xf32, #tpu.memory_space<vmem>>, vector<1x8x128xf32>
    %5 = vector.shape_cast %4 : vector<1x8x128xf32> to vector<8x128xf32>
    %c0_8 = arith.constant 0 : index
    %c0_9 = arith.constant 0 : index
    %6 = vector.load %arg4[%c0_8, %c0_9] : memref<128x128xf32, #tpu.memory_space<vmem>>, vector<128x128xf32>
    %cst = arith.constant dense<0.000000e+00> : vector<8x128xf32>
    %7 = tpu.matmul %1, %6, %cst {dimension_numbers = #tpu.dot_dimension_numbers<[1], [0], [0], [1], [0, 0, 1, 1], [], []>} : vector<8x128xf32>, vector<128x128xf32>, vector<8x128xf32> -> vector<8x128xf32>
    %c0_10 = arith.constant 0 : index
    %c0_11 = arith.constant 0 : index
    %8 = vector.load %arg5[%c0_10, %c0_11] : memref<1x128xf32, #tpu.memory_space<vmem>>, vector<1x128xf32>
    %9 = vector.broadcast %8 : vector<1x128xf32> to vector<8x128xf32>
    %10 = arith.addf %7, %9 : vector<8x128xf32>
    %c0_12 = arith.constant 0 : index
    %c0_13 = arith.constant 0 : index
    %11 = vector.load %arg6[%c0_12, %c0_13] : memref<128x128xf32, #tpu.memory_space<vmem>>, vector<128x128xf32>
    %cst_14 = arith.constant dense<0.000000e+00> : vector<8x128xf32>
    %12 = tpu.matmul %3, %11, %cst_14 {dimension_numbers = #tpu.dot_dimension_numbers<[1], [0], [0], [1], [0, 0, 1, 1], [], []>} : vector<8x128xf32>, vector<128x128xf32>, vector<8x128xf32> -> vector<8x128xf32>
    %c0_15 = arith.constant 0 : index
    %c0_16 = arith.constant 0 : index
    %13 = vector.load %arg7[%c0_15, %c0_16] : memref<1x128xf32, #tpu.memory_space<vmem>>, vector<1x128xf32>
    %14 = vector.broadcast %13 : vector<1x128xf32> to vector<8x128xf32>
    %15 = arith.addf %12, %14 : vector<8x128xf32>
    %c0_17 = arith.constant 0 : index
    %c0_18 = arith.constant 0 : index
    %16 = vector.load %arg8[%c0_17, %c0_18] : memref<128x128xf32, #tpu.memory_space<vmem>>, vector<128x128xf32>
    %cst_19 = arith.constant dense<0.000000e+00> : vector<8x128xf32>
    %17 = tpu.matmul %5, %16, %cst_19 {dimension_numbers = #tpu.dot_dimension_numbers<[1], [0], [0], [1], [0, 0, 1, 1], [], []>} : vector<8x128xf32>, vector<128x128xf32>, vector<8x128xf32> -> vector<8x128xf32>
    %c0_20 = arith.constant 0 : index
    %c0_21 = arith.constant 0 : index
    %18 = vector.load %arg9[%c0_20, %c0_21] : memref<1x128xf32, #tpu.memory_space<vmem>>, vector<1x128xf32>
    %19 = vector.broadcast %18 : vector<1x128xf32> to vector<8x128xf32>
    %20 = arith.addf %17, %19 : vector<8x128xf32>
    %21 = vector.extract_strided_slice %10 {offsets = [0, 0], sizes = [8, 32], strides = [1, 1]} : vector<8x128xf32> to vector<8x32xf32>
    %22 = vector.extract_strided_slice %15 {offsets = [0, 0], sizes = [8, 32], strides = [1, 1]} : vector<8x128xf32> to vector<8x32xf32>
    %23 = vector.extract_strided_slice %20 {offsets = [0, 0], sizes = [8, 32], strides = [1, 1]} : vector<8x128xf32> to vector<8x32xf32>
    %cst_22 = arith.constant dense<0.000000e+00> : vector<8x8xf32>
    %24 = tpu.matmul %21, %22, %cst_22 {dimension_numbers = #tpu.dot_dimension_numbers<[1], [1], [0], [0], [0, 0, 1, 0], [], []>} : vector<8x32xf32>, vector<8x32xf32>, vector<8x8xf32> -> vector<8x8xf32>
    %cst_23 = arith.constant 0.176776692 : f32
    %25 = vector.broadcast %cst_23 : f32 to vector<8x8xf32>
    %26 = arith.mulf %24, %25 : vector<8x8xf32>
    %cst_24 = arith.constant dense<0xFF800000> : vector<8xf32>
    %27 = vector.multi_reduction <maximumf>, %26, %cst_24 [1] : vector<8x8xf32> to vector<8xf32>
    %28 = vector.shape_cast %27 : vector<8xf32> to vector<8x1xf32>
    %29 = vector.broadcast %28 : vector<8x1xf32> to vector<8x8xf32>
    %30 = arith.subf %26, %29 : vector<8x8xf32>
    %31 = math.exp %30 : vector<8x8xf32>
    %cst_25 = arith.constant dense<0.000000e+00> : vector<8xf32>
    %32 = vector.multi_reduction <add>, %31, %cst_25 [1] : vector<8x8xf32> to vector<8xf32>
    %33 = vector.shape_cast %32 : vector<8xf32> to vector<8x1xf32>
    %34 = vector.broadcast %33 : vector<8x1xf32> to vector<8x8xf32>
    %35 = arith.divf %31, %34 : vector<8x8xf32>
    %c0_26 = arith.constant 0 : index
    %c0_27 = arith.constant 0 : index
    %c0_28 = arith.constant 0 : index
    %c0_29 = arith.constant 0 : index
    %36 = vector.load %arg13[%c0_26, %c0_27, %c0_28, %c0_29] : memref<1x4x8x8xf32, #tpu.memory_space<vmem>>, vector<1x1x8x8xf32>
    %37 = vector.shape_cast %36 : vector<1x1x8x8xf32> to vector<8x8xf32>
    %38 = vector.shape_cast %35 : vector<8x8xf32> to vector<1x1x8x8xf32>
    tpu.vector_store %arg13[%c0_26, %c0_27, %c0_28, %c0_29], %38 {strides = array<i32>} : memref<1x4x8x8xf32, #tpu.memory_space<vmem>>, vector<1x1x8x8xf32>,
    %cst_30 = arith.constant dense<0.000000e+00> : vector<8x32xf32>
    %39 = tpu.matmul %35, %23, %cst_30 {dimension_numbers = #tpu.dot_dimension_numbers<[1], [0], [0], [1], [0, 0, 1, 1], [], []>} : vector<8x8xf32>, vector<8x32xf32>, vector<8x32xf32> -> vector<8x32xf32>
    %40 = vector.extract_strided_slice %10 {offsets = [0, 32], sizes = [8, 32], strides = [1, 1]} : vector<8x128xf32> to vector<8x32xf32>
    %41 = vector.extract_strided_slice %15 {offsets = [0, 32], sizes = [8, 32], strides = [1, 1]} : vector<8x128xf32> to vector<8x32xf32>
    %42 = vector.extract_strided_slice %20 {offsets = [0, 32], sizes = [8, 32], strides = [1, 1]} : vector<8x128xf32> to vector<8x32xf32>
    %cst_31 = arith.constant dense<0.000000e+00> : vector<8x8xf32>
    %43 = tpu.matmul %40, %41, %cst_31 {dimension_numbers = #tpu.dot_dimension_numbers<[1], [1], [0], [0], [0, 0, 1, 0], [], []>} : vector<8x32xf32>, vector<8x32xf32>, vector<8x8xf32> -> vector<8x8xf32>
    %cst_32 = arith.constant 0.176776692 : f32
    %44 = vector.broadcast %cst_32 : f32 to vector<8x8xf32>
    %45 = arith.mulf %43, %44 : vector<8x8xf32>
    %cst_33 = arith.constant dense<0xFF800000> : vector<8xf32>
    %46 = vector.multi_reduction <maximumf>, %45, %cst_33 [1] : vector<8x8xf32> to vector<8xf32>
    %47 = vector.shape_cast %46 : vector<8xf32> to vector<8x1xf32>
    %48 = vector.broadcast %47 : vector<8x1xf32> to vector<8x8xf32>
    %49 = arith.subf %45, %48 : vector<8x8xf32>
    %50 = math.exp %49 : vector<8x8xf32>
    %cst_34 = arith.constant dense<0.000000e+00> : vector<8xf32>
    %51 = vector.multi_reduction <add>, %50, %cst_34 [1] : vector<8x8xf32> to vector<8xf32>
    %52 = vector.shape_cast %51 : vector<8xf32> to vector<8x1xf32>
    %53 = vector.broadcast %52 : vector<8x1xf32> to vector<8x8xf32>
    %54 = arith.divf %50, %53 : vector<8x8xf32>
    %c0_35 = arith.constant 0 : index
    %c1 = arith.constant 1 : index
    %c0_36 = arith.constant 0 : index
    %c0_37 = arith.constant 0 : index
    %55 = vector.load %arg13[%c0_35, %c1, %c0_36, %c0_37] : memref<1x4x8x8xf32, #tpu.memory_space<vmem>>, vector<1x1x8x8xf32>
    %56 = vector.shape_cast %55 : vector<1x1x8x8xf32> to vector<8x8xf32>
    %57 = vector.shape_cast %54 : vector<8x8xf32> to vector<1x1x8x8xf32>
    tpu.vector_store %arg13[%c0_35, %c1, %c0_36, %c0_37], %57 {strides = array<i32>} : memref<1x4x8x8xf32, #tpu.memory_space<vmem>>, vector<1x1x8x8xf32>,
    %cst_38 = arith.constant dense<0.000000e+00> : vector<8x32xf32>
    %58 = tpu.matmul %54, %42, %cst_38 {dimension_numbers = #tpu.dot_dimension_numbers<[1], [0], [0], [1], [0, 0, 1, 1], [], []>} : vector<8x8xf32>, vector<8x32xf32>, vector<8x32xf32> -> vector<8x32xf32>
    %59 = vector.extract_strided_slice %10 {offsets = [0, 64], sizes = [8, 32], strides = [1, 1]} : vector<8x128xf32> to vector<8x32xf32>
    %60 = vector.extract_strided_slice %15 {offsets = [0, 64], sizes = [8, 32], strides = [1, 1]} : vector<8x128xf32> to vector<8x32xf32>
    %61 = vector.extract_strided_slice %20 {offsets = [0, 64], sizes = [8, 32], strides = [1, 1]} : vector<8x128xf32> to vector<8x32xf32>
    %cst_39 = arith.constant dense<0.000000e+00> : vector<8x8xf32>
    %62 = tpu.matmul %59, %60, %cst_39 {dimension_numbers = #tpu.dot_dimension_numbers<[1], [1], [0], [0], [0, 0, 1, 0], [], []>} : vector<8x32xf32>, vector<8x32xf32>, vector<8x8xf32> -> vector<8x8xf32>
    %cst_40 = arith.constant 0.176776692 : f32
    %63 = vector.broadcast %cst_40 : f32 to vector<8x8xf32>
    %64 = arith.mulf %62, %63 : vector<8x8xf32>
    %cst_41 = arith.constant dense<0xFF800000> : vector<8xf32>
    %65 = vector.multi_reduction <maximumf>, %64, %cst_41 [1] : vector<8x8xf32> to vector<8xf32>
    %66 = vector.shape_cast %65 : vector<8xf32> to vector<8x1xf32>
    %67 = vector.broadcast %66 : vector<8x1xf32> to vector<8x8xf32>
    %68 = arith.subf %64, %67 : vector<8x8xf32>
    %69 = math.exp %68 : vector<8x8xf32>
    %cst_42 = arith.constant dense<0.000000e+00> : vector<8xf32>
    %70 = vector.multi_reduction <add>, %69, %cst_42 [1] : vector<8x8xf32> to vector<8xf32>
    %71 = vector.shape_cast %70 : vector<8xf32> to vector<8x1xf32>
    %72 = vector.broadcast %71 : vector<8x1xf32> to vector<8x8xf32>
    %73 = arith.divf %69, %72 : vector<8x8xf32>
    %c0_43 = arith.constant 0 : index
    %c2 = arith.constant 2 : index
    %c0_44 = arith.constant 0 : index
    %c0_45 = arith.constant 0 : index
    %74 = vector.load %arg13[%c0_43, %c2, %c0_44, %c0_45] : memref<1x4x8x8xf32, #tpu.memory_space<vmem>>, vector<1x1x8x8xf32>
    %75 = vector.shape_cast %74 : vector<1x1x8x8xf32> to vector<8x8xf32>
    %76 = vector.shape_cast %73 : vector<8x8xf32> to vector<1x1x8x8xf32>
    tpu.vector_store %arg13[%c0_43, %c2, %c0_44, %c0_45], %76 {strides = array<i32>} : memref<1x4x8x8xf32, #tpu.memory_space<vmem>>, vector<1x1x8x8xf32>,
    %cst_46 = arith.constant dense<0.000000e+00> : vector<8x32xf32>
    %77 = tpu.matmul %73, %61, %cst_46 {dimension_numbers = #tpu.dot_dimension_numbers<[1], [0], [0], [1], [0, 0, 1, 1], [], []>} : vector<8x8xf32>, vector<8x32xf32>, vector<8x32xf32> -> vector<8x32xf32>
    %78 = vector.extract_strided_slice %10 {offsets = [0, 96], sizes = [8, 32], strides = [1, 1]} : vector<8x128xf32> to vector<8x32xf32>
    %79 = vector.extract_strided_slice %15 {offsets = [0, 96], sizes = [8, 32], strides = [1, 1]} : vector<8x128xf32> to vector<8x32xf32>
    %80 = vector.extract_strided_slice %20 {offsets = [0, 96], sizes = [8, 32], strides = [1, 1]} : vector<8x128xf32> to vector<8x32xf32>
    %cst_47 = arith.constant dense<0.000000e+00> : vector<8x8xf32>
    %81 = tpu.matmul %78, %79, %cst_47 {dimension_numbers = #tpu.dot_dimension_numbers<[1], [1], [0], [0], [0, 0, 1, 0], [], []>} : vector<8x32xf32>, vector<8x32xf32>, vector<8x8xf32> -> vector<8x8xf32>
    %cst_48 = arith.constant 0.176776692 : f32
    %82 = vector.broadcast %cst_48 : f32 to vector<8x8xf32>
    %83 = arith.mulf %81, %82 : vector<8x8xf32>
    %cst_49 = arith.constant dense<0xFF800000> : vector<8xf32>
    %84 = vector.multi_reduction <maximumf>, %83, %cst_49 [1] : vector<8x8xf32> to vector<8xf32>
    %85 = vector.shape_cast %84 : vector<8xf32> to vector<8x1xf32>
    %86 = vector.broadcast %85 : vector<8x1xf32> to vector<8x8xf32>
    %87 = arith.subf %83, %86 : vector<8x8xf32>
    %88 = math.exp %87 : vector<8x8xf32>
    %cst_50 = arith.constant dense<0.000000e+00> : vector<8xf32>
    %89 = vector.multi_reduction <add>, %88, %cst_50 [1] : vector<8x8xf32> to vector<8xf32>
    %90 = vector.shape_cast %89 : vector<8xf32> to vector<8x1xf32>
    %91 = vector.broadcast %90 : vector<8x1xf32> to vector<8x8xf32>
    %92 = arith.divf %88, %91 : vector<8x8xf32>
    %c0_51 = arith.constant 0 : index
    %c3 = arith.constant 3 : index
    %c0_52 = arith.constant 0 : index
    %c0_53 = arith.constant 0 : index
    %93 = vector.load %arg13[%c0_51, %c3, %c0_52, %c0_53] : memref<1x4x8x8xf32, #tpu.memory_space<vmem>>, vector<1x1x8x8xf32>
    %94 = vector.shape_cast %93 : vector<1x1x8x8xf32> to vector<8x8xf32>
    %95 = vector.shape_cast %92 : vector<8x8xf32> to vector<1x1x8x8xf32>
    tpu.vector_store %arg13[%c0_51, %c3, %c0_52, %c0_53], %95 {strides = array<i32>} : memref<1x4x8x8xf32, #tpu.memory_space<vmem>>, vector<1x1x8x8xf32>,
    %cst_54 = arith.constant dense<0.000000e+00> : vector<8x32xf32>
    %96 = tpu.matmul %92, %80, %cst_54 {dimension_numbers = #tpu.dot_dimension_numbers<[1], [0], [0], [1], [0, 0, 1, 1], [], []>} : vector<8x8xf32>, vector<8x32xf32>, vector<8x32xf32> -> vector<8x32xf32>
    %97 = tpu.concatenate %39, %58, %77, %96 in 1 : vector<8x32xf32>, vector<8x32xf32>, vector<8x32xf32>, vector<8x32xf32> -> vector<8x128xf32>
    %c0_55 = arith.constant 0 : index
    %c0_56 = arith.constant 0 : index
    %98 = vector.load %arg10[%c0_55, %c0_56] : memref<128x128xf32, #tpu.memory_space<vmem>>, vector<128x128xf32>
    %cst_57 = arith.constant dense<0.000000e+00> : vector<8x128xf32>
    %99 = tpu.matmul %97, %98, %cst_57 {dimension_numbers = #tpu.dot_dimension_numbers<[1], [0], [0], [1], [0, 0, 1, 1], [], []>} : vector<8x128xf32>, vector<128x128xf32>, vector<8x128xf32> -> vector<8x128xf32>
    %c0_58 = arith.constant 0 : index
    %c0_59 = arith.constant 0 : index
    %100 = vector.load %arg11[%c0_58, %c0_59] : memref<1x128xf32, #tpu.memory_space<vmem>>, vector<1x128xf32>
    %101 = vector.broadcast %100 : vector<1x128xf32> to vector<8x128xf32>
    %102 = arith.addf %99, %101 : vector<8x128xf32>
    %c0_60 = arith.constant 0 : index
    %c0_61 = arith.constant 0 : index
    %c0_62 = arith.constant 0 : index
    %103 = vector.load %arg12[%c0_60, %c0_61, %c0_62] : memref<1x8x128xf32, #tpu.memory_space<vmem>>, vector<1x8x128xf32>
    %104 = vector.shape_cast %103 : vector<1x8x128xf32> to vector<8x128xf32>
    %105 = vector.shape_cast %102 : vector<8x128xf32> to vector<1x8x128xf32>
    tpu.vector_store %arg12[%c0_60, %c0_61, %c0_62], %105 {strides = array<i32>} : memref<1x8x128xf32, #tpu.memory_space<vmem>>, vector<1x8x128xf32>,
    return
  }
  func.func @transform_0(%arg0: i32) -> (i32, i32, i32) {
    %c0_i32 = arith.constant 0 : i32
    %c0_i32_0 = arith.constant 0 : i32
    %c0_i32_1 = arith.constant 0 : i32
    return %arg0, %c0_i32, %c0_i32_0 : i32, i32, i32
  }
  func.func @transform_1(%arg0: i32) -> (i32, i32, i32) {
    %c0_i32 = arith.constant 0 : i32
    %c0_i32_0 = arith.constant 0 : i32
    %c0_i32_1 = arith.constant 0 : i32
    return %arg0, %c0_i32, %c0_i32_0 : i32, i32, i32
  }
  func.func @transform_2(%arg0: i32) -> (i32, i32, i32) {
    %c0_i32 = arith.constant 0 : i32
    %c0_i32_0 = arith.constant 0 : i32
    %c0_i32_1 = arith.constant 0 : i32
    return %arg0, %c0_i32, %c0_i32_0 : i32, i32, i32
  }
  func.func @transform_3(%arg0: i32) -> (i32, i32) {
    %c0_i32 = arith.constant 0 : i32
    %c0_i32_0 = arith.constant 0 : i32
    %c0_i32_1 = arith.constant 0 : i32
    return %c0_i32, %c0_i32_0 : i32, i32
  }
  func.func @transform_4(%arg0: i32) -> (i32, i32) {
    %c0_i32 = arith.constant 0 : i32
    %c0_i32_0 = arith.constant 0 : i32
    %c0_i32_1 = arith.constant 0 : i32
    return %c0_i32, %c0_i32_0 : i32, i32
  }
  func.func @transform_5(%arg0: i32) -> (i32, i32) {
    %c0_i32 = arith.constant 0 : i32
    %c0_i32_0 = arith.constant 0 : i32
    %c0_i32_1 = arith.constant 0 : i32
    return %c0_i32, %c0_i32_0 : i32, i32
  }
  func.func @transform_6(%arg0: i32) -> (i32, i32) {
    %c0_i32 = arith.constant 0 : i32
    %c0_i32_0 = arith.constant 0 : i32
    %c0_i32_1 = arith.constant 0 : i32
    return %c0_i32, %c0_i32_0 : i32, i32
  }
  func.func @transform_7(%arg0: i32) -> (i32, i32) {
    %c0_i32 = arith.constant 0 : i32
    %c0_i32_0 = arith.constant 0 : i32
    %c0_i32_1 = arith.constant 0 : i32
    return %c0_i32, %c0_i32_0 : i32, i32
  }
  func.func @transform_8(%arg0: i32) -> (i32, i32) {
    %c0_i32 = arith.constant 0 : i32
    %c0_i32_0 = arith.constant 0 : i32
    %c0_i32_1 = arith.constant 0 : i32
    return %c0_i32, %c0_i32_0 : i32, i32
  }
  func.func @transform_9(%arg0: i32) -> (i32, i32) {
    %c0_i32 = arith.constant 0 : i32
    %c0_i32_0 = arith.constant 0 : i32
    %c0_i32_1 = arith.constant 0 : i32
    return %c0_i32, %c0_i32_0 : i32, i32
  }
  func.func @transform_10(%arg0: i32) -> (i32, i32) {
    %c0_i32 = arith.constant 0 : i32
    %c0_i32_0 = arith.constant 0 : i32
    %c0_i32_1 = arith.constant 0 : i32
    return %c0_i32, %c0_i32_0 : i32, i32
  }
  func.func @transform_11(%arg0: i32) -> (i32, i32, i32) {
    %c0_i32 = arith.constant 0 : i32
    %c0_i32_0 = arith.constant 0 : i32
    %c0_i32_1 = arith.constant 0 : i32
    return %arg0, %c0_i32, %c0_i32_0 : i32, i32, i32
  }
  func.func @transform_12(%arg0: i32) -> (i32, i32, i32, i32) {
    %c0_i32 = arith.constant 0 : i32
    %c0_i32_0 = arith.constant 0 : i32
    %c0_i32_1 = arith.constant 0 : i32
    %c0_i32_2 = arith.constant 0 : i32
    return %arg0, %c0_i32, %c0_i32_0, %c0_i32_1 : i32, i32, i32, i32
  }
}

</mosaic_0001>

<llo_original>
// kernel: tpu_custom_call.1
$region0: #{tpu_custom_call.1}
  #allocation0 [shape = 'u32[]', space=smem, size = 0x4, offset = 0x4, fixed_abs, tag = 'smem constant byte address 0x4 - core index']
  #allocation1 [shape = 'u32[72,128]{1,0:T(1,128)}', space=vmem, size = 0x9000, scoped, tag = 'internal scratch']
  %s0 = inlined_call_operand.hbm [shape: f32[2,8,128], index: 0, kind: input, shape index: {}]
  %s1 = inlined_call_operand.hbm [shape: f32[2,8,128], index: 1, kind: input, shape index: {}]
  %s2 = inlined_call_operand.hbm [shape: f32[2,8,128], index: 2, kind: input, shape index: {}]
  %s3 = inlined_call_operand.hbm [shape: f32[128,128], index: 3, kind: input, shape index: {}]
  %s4 = inlined_call_operand.vmem [shape: f32[1,128], index: 4, kind: input, shape index: {}]
  %s5 = inlined_call_operand.hbm [shape: f32[128,128], index: 5, kind: input, shape index: {}]
  %s6 = inlined_call_operand.vmem [shape: f32[1,128], index: 6, kind: input, shape index: {}]
  %s7 = inlined_call_operand.hbm [shape: f32[128,128], index: 7, kind: input, shape index: {}]
  %s8 = inlined_call_operand.vmem [shape: f32[1,128], index: 8, kind: input, shape index: {}]
  %s9 = inlined_call_operand.hbm [shape: f32[128,128], index: 9, kind: input, shape index: {}]
  %s10 = inlined_call_operand.vmem [shape: f32[1,128], index: 10, kind: input, shape index: {}]
  %s11 = inlined_call_operand.hbm [shape: f32[2,8,128], index: 11, kind: output, shape index: {0}]
  %s12 = inlined_call_operand.hbm [shape: f32[2,4,8,8], index: 12, kind: output, shape index: {1}]
  %13 = xla_tuple %s11, %s12
  %s14 = sld [smem:[#allocation0]]
  $region113: #{tpu_custom_call.1} parent=0
    _
  %s16 = ssub.s32 1, %s14
  %s17 = scalar_select 0, %s16, %s14
  $region1: #{tpu_custom_call.1} parent=0
    #allocation2 [shape = 'u8[8192]{0}', space=vmem, size = 0x2000, scoped, tag = 'input window, operand 0']
    #allocation3 [shape = 's32[2]{0}', space=sflag, size = 0x8, scoped, tag = 'scoped memory for tpu_custom_call.1']
    #allocation4 [shape = 's32[2]{0}', space=sflag, size = 0x8, scoped, tag = 'scoped memory for tpu_custom_call.1']
    #allocation5 [shape = 'u8[8192]{0}', space=vmem, size = 0x2000, scoped, tag = 'input window, operand 1']
    #allocation6 [shape = 's32[2]{0}', space=sflag, size = 0x8, scoped, tag = 'scoped memory for tpu_custom_call.1']
    #allocation7 [shape = 'u8[8192]{0}', space=vmem, size = 0x2000, scoped, tag = 'input window, operand 2']
    #allocation8 [shape = 'u8[65536]{0}', space=vmem, size = 0x10000, scoped, tag = 'input window, operand 3, single buffered']
    #allocation9 [shape = 's32[1]{0}', space=sflag, size = 0x4, scoped, tag = 'scoped memory for tpu_custom_call.1']
    #allocation10 [shape = 'u8[65536]{0}', space=vmem, size = 0x10000, scoped, tag = 'input window, operand 5, single buffered']
    #allocation11 [shape = 'u8[65536]{0}', space=vmem, size = 0x10000, scoped, tag = 'input window, operand 7, single buffered']
    #allocation12 [shape = 's32[1]{0}', space=sflag, size = 0x4, scoped, tag = 'scoped memory for tpu_custom_call.1']
    #allocation13 [shape = 'u8[65536]{0}', space=vmem, size = 0x10000, scoped, tag = 'input window, operand 9, single buffered']
    #allocation14 [shape = 'u8[8192]{0}', space=vmem, size = 0x2000, scoped, tag = 'output window, operand 0']
    #allocation15 [shape = 'u8[32768]{0}', space=vmem, size = 0x8000, scoped, tag = 'output window, operand 1']
    #allocation16 [shape = 's32[2]{0}', space=sflag, size = 0x8, scoped, tag = 'scoped memory for tpu_custom_call.1']
    %18 = vsyncpa [#allocation3], 0
    %s19 = scalar_lea.sflag [#allocation3], 1
    %20 = vsyncpa %s19, 0
    %21 = vsyncpa [#allocation6], 0
    %s22 = scalar_lea.sflag [#allocation6], 1
    %23 = vsyncpa %s22, 0
    %24 = vsyncpa [#allocation9], 0
    %25 = vsyncpa [#allocation12], 0
    %26 = vsyncpa [#allocation4], 0
    %s27 = scalar_lea.sflag [#allocation4], 1
    %28 = vsyncpa %s27, 0
    %29 = vsyncpa [#allocation16], 0
    %s30 = scalar_lea.sflag [#allocation16], 1
    %31 = vsyncpa %s30, 0
    loop: start=0, step=1, limit=4
    $region2: #{tpu_custom_call.1} parent=1 // loop_pre_header
      _
    $region3: #{tpu_custom_call.1} parent=1 // loop_header
      %s33 = sphi 0, %s37
      %p34 = scmp.ge.s32.totalorder %s33, 4
      %s43 = sphi 0, %s45
      %s46 = sphi 0, %s43
      %s47 = sphi 0, %s46
      %s63 = sphi 0, %s47
      %s69 = sphi 0, %s71
      %s72 = sphi 0, %s69
      %s73 = sphi 0, %s72
      %s89 = sphi 0, %s73
      %s95 = sphi 0, %s97
      %s98 = sphi 0, %s95
      %s99 = sphi 0, %s98
      %s115 = sphi 0, %s99
      %s119 = sphi 0, %s119
      %s121 = sphi 0, %s119
      %s122 = sphi 0, %s121
      %s136 = sphi 0, %s122
      %s140 = sphi 0, %s140
      %s142 = sphi 0, %s140
      %s143 = sphi 0, %s142
      %s157 = sphi 0, %s143
      %s161 = sphi 0, %s161
      %s163 = sphi 0, %s161
      %s164 = sphi 0, %s163
      %s178 = sphi 0, %s164
      %s182 = sphi 0, %s182
      %s184 = sphi 0, %s182
      %s185 = sphi 0, %s184
      %s199 = sphi 0, %s185
      %s203 = sphi 0, %s203
      %s205 = sphi 0, %s203
      %s206 = sphi 0, %s205
      %s220 = sphi 0, %s206
      %s224 = sphi 0, %s224
      %s226 = sphi 0, %s224
      %s227 = sphi 0, %s226
      %s241 = sphi 0, %s227
      %s245 = sphi 0, %s245
      %s247 = sphi 0, %s245
      %s248 = sphi 0, %s247
      %s262 = sphi 0, %s248
      %s266 = sphi 0, %s266
      %s268 = sphi 0, %s266
      %s269 = sphi 0, %s268
      %s283 = sphi 0, %s269
      %s289 = sphi 0, %s291
      %s292 = sphi 0, %s289
      %s293 = sphi 0, %s292
      %s309 = sphi 0, %s293
      %s315 = sphi 0, %s317
      %s318 = sphi 0, %s315
      %s319 = sphi 0, %s318
      %s335 = sphi 0, %s319
    $region4: #{tpu_custom_call.1} parent=1 // loop_header_branch
      %36 = sbr.rel (%p34) target = $region8
    $region5: #{tpu_custom_call.1} parent=1 // loop_body
      %s38 = ssub.s32 %s33, 1
      %s39 = ssub.s32 %s33, 2
      %s40 = sadd.s32 %s33, 1
      %s41 = ssub.s32 %s33, %s40
      %p42 = scmp.eq.s32.totalorder %s41, 0
      %s44 = sadd.s32 %s43, 1
      %s45 = scalar_select %p42, %s43, %s44
      %p48 = pneg %p42
      %p49 = scmp.eq.s32.totalorder %s33, 1
      %p50 = por %p48, %p49
      %p51 = scmp.ne.s32.totalorder %s43, %s46
      %p52 = scmp.eq.s32.totalorder %s33, 0
      %p53 = por %p51, %p52
      %p54 = scmp.ne.s32.totalorder %s43, %s46
      %p55 = scmp.eq.s32.totalorder %s38, 1
      %p56 = por %p54, %p55
      %p57 = scmp.ne.s32.totalorder %s46, %s47
      %p58 = scmp.eq.s32.totalorder %s38, 0
      %p59 = por %p57, %p58
      %p60 = scmp.ne.s32.totalorder %s46, %s47
      %p61 = scmp.eq.s32.totalorder %s39, 1
      %p62 = por %p60, %p61
      %p64 = scmp.ne.s32.totalorder %s47, %s63
      %p65 = scmp.eq.s32.totalorder %s39, 0
      %p66 = por %p64, %p65
      %s67 = ssub.s32 %s33, %s40
      %p68 = scmp.eq.s32.totalorder %s67, 0
      %s70 = sadd.s32 %s69, 1
      %s71 = scalar_select %p68, %s69, %s70
      %p74 = pneg %p68
      %p75 = scmp.eq.s32.totalorder %s33, 1
      %p76 = por %p74, %p75
      %p77 = scmp.ne.s32.totalorder %s69, %s72
      %p78 = scmp.eq.s32.totalorder %s33, 0
      %p79 = por %p77, %p78
      %p80 = scmp.ne.s32.totalorder %s69, %s72
      %p81 = scmp.eq.s32.totalorder %s38, 1
      %p82 = por %p80, %p81
      %p83 = scmp.ne.s32.totalorder %s72, %s73
      %p84 = scmp.eq.s32.totalorder %s38, 0
      %p85 = por %p83, %p84
      %p86 = scmp.ne.s32.totalorder %s72, %s73
      %p87 = scmp.eq.s32.totalorder %s39, 1
      %p88 = por %p86, %p87
      %p90 = scmp.ne.s32.totalorder %s73, %s89
      %p91 = scmp.eq.s32.totalorder %s39, 0
      %p92 = por %p90, %p91
      %s93 = ssub.s32 %s33, %s40
      %p94 = scmp.eq.s32.totalorder %s93, 0
      %s96 = sadd.s32 %s95, 1
      %s97 = scalar_select %p94, %s95, %s96
      %p100 = pneg %p94
      %p101 = scmp.eq.s32.totalorder %s33, 1
      %p102 = por %p100, %p101
      %p103 = scmp.ne.s32.totalorder %s95, %s98
      %p104 = scmp.eq.s32.totalorder %s33, 0
      %p105 = por %p103, %p104
      %p106 = scmp.ne.s32.totalorder %s95, %s98
      %p107 = scmp.eq.s32.totalorder %s38, 1
      %p108 = por %p106, %p107
      %p109 = scmp.ne.s32.totalorder %s98, %s99
      %p110 = scmp.eq.s32.totalorder %s38, 0
      %p111 = por %p109, %p110
      %p112 = scmp.ne.s32.totalorder %s98, %s99
      %p113 = scmp.eq.s32.totalorder %s39, 1
      %p114 = por %p112, %p113
      %p116 = scmp.ne.s32.totalorder %s99, %s115
      %p117 = scmp.eq.s32.totalorder %s39, 0
      %p118 = por %p116, %p117
      %s120 = sadd.s32 %s119, 1
      %p123 = scmp.eq.s32.totalorder %s33, 1
      %p124 = scmp.ne.s32.totalorder %s119, %s121
      %p125 = scmp.eq.s32.totalorder %s33, 0
      %p126 = por %p124, %p125
      %p127 = scmp.ne.s32.totalorder %s119, %s121
      %p128 = scmp.eq.s32.totalorder %s38, 1
      %p129 = por %p127, %p128
      %p130 = scmp.ne.s32.totalorder %s121, %s122
      %p131 = scmp.eq.s32.totalorder %s38, 0
      %p132 = por %p130, %p131
      %p133 = scmp.ne.s32.totalorder %s121, %s122
      %p134 = scmp.eq.s32.totalorder %s39, 1
      %p135 = por %p133, %p134
      %p137 = scmp.ne.s32.totalorder %s122, %s136
      %p138 = scmp.eq.s32.totalorder %s39, 0
      %p139 = por %p137, %p138
      %s141 = sadd.s32 %s140, 1
      %p144 = scmp.eq.s32.totalorder %s33, 1
      %p145 = scmp.ne.s32.totalorder %s140, %s142
      %p146 = scmp.eq.s32.totalorder %s33, 0
      %p147 = por %p145, %p146
      %p148 = scmp.ne.s32.totalorder %s140, %s142
      %p149 = scmp.eq.s32.totalorder %s38, 1
      %p150 = por %p148, %p149
      %p151 = scmp.ne.s32.totalorder %s142, %s143
      %p152 = scmp.eq.s32.totalorder %s38, 0
      %p153 = por %p151, %p152
      %p154 = scmp.ne.s32.totalorder %s142, %s143
      %p155 = scmp.eq.s32.totalorder %s39, 1
      %p156 = por %p154, %p155
      %p158 = scmp.ne.s32.totalorder %s143, %s157
      %p159 = scmp.eq.s32.totalorder %s39, 0
      %p160 = por %p158, %p159
      %s162 = sadd.s32 %s161, 1
      %p165 = scmp.eq.s32.totalorder %s33, 1
      %p166 = scmp.ne.s32.totalorder %s161, %s163
      %p167 = scmp.eq.s32.totalorder %s33, 0
      %p168 = por %p166, %p167
      %p169 = scmp.ne.s32.totalorder %s161, %s163
      %p170 = scmp.eq.s32.totalorder %s38, 1
      %p171 = por %p169, %p170
      %p172 = scmp.ne.s32.totalorder %s163, %s164
      %p173 = scmp.eq.s32.totalorder %s38, 0
      %p174 = por %p172, %p173
      %p175 = scmp.ne.s32.totalorder %s163, %s164
      %p176 = scmp.eq.s32.totalorder %s39, 1
      %p177 = por %p175, %p176
      %p179 = scmp.ne.s32.totalorder %s164, %s178
      %p180 = scmp.eq.s32.totalorder %s39, 0
      %p181 = por %p179, %p180
      %s183 = sadd.s32 %s182, 1
      %p186 = scmp.eq.s32.totalorder %s33, 1
      %p187 = scmp.ne.s32.totalorder %s182, %s184
      %p188 = scmp.eq.s32.totalorder %s33, 0
      %p189 = por %p187, %p188
      %p190 = scmp.ne.s32.totalorder %s182, %s184
      %p191 = scmp.eq.s32.totalorder %s38, 1
      %p192 = por %p190, %p191
      %p193 = scmp.ne.s32.totalorder %s184, %s185
      %p194 = scmp.eq.s32.totalorder %s38, 0
      %p195 = por %p193, %p194
      %p196 = scmp.ne.s32.totalorder %s184, %s185
      %p197 = scmp.eq.s32.totalorder %s39, 1
      %p198 = por %p196, %p197
      %p200 = scmp.ne.s32.totalorder %s185, %s199
      %p201 = scmp.eq.s32.totalorder %s39, 0
      %p202 = por %p200, %p201
      %s204 = sadd.s32 %s203, 1
      %p207 = scmp.eq.s32.totalorder %s33, 1
      %p208 = scmp.ne.s32.totalorder %s203, %s205
      %p209 = scmp.eq.s32.totalorder %s33, 0
      %p210 = por %p208, %p209
      %p211 = scmp.ne.s32.totalorder %s203, %s205
      %p212 = scmp.eq.s32.totalorder %s38, 1
      %p213 = por %p211, %p212
      %p214 = scmp.ne.s32.totalorder %s205, %s206
      %p215 = scmp.eq.s32.totalorder %s38, 0
      %p216 = por %p214, %p215
      %p217 = scmp.ne.s32.totalorder %s205, %s206
      %p218 = scmp.eq.s32.totalorder %s39, 1
      %p219 = por %p217, %p218
      %p221 = scmp.ne.s32.totalorder %s206, %s220
      %p222 = scmp.eq.s32.totalorder %s39, 0
      %p223 = por %p221, %p222
      %s225 = sadd.s32 %s224, 1
      %p228 = scmp.eq.s32.totalorder %s33, 1
      %p229 = scmp.ne.s32.totalorder %s224, %s226
      %p230 = scmp.eq.s32.totalorder %s33, 0
      %p231 = por %p229, %p230
      %p232 = scmp.ne.s32.totalorder %s224, %s226
      %p233 = scmp.eq.s32.totalorder %s38, 1
      %p234 = por %p232, %p233
      %p235 = scmp.ne.s32.totalorder %s226, %s227
      %p236 = scmp.eq.s32.totalorder %s38, 0
      %p237 = por %p235, %p236
      %p238 = scmp.ne.s32.totalorder %s226, %s227
      %p239 = scmp.eq.s32.totalorder %s39, 1
      %p240 = por %p238, %p239
      %p242 = scmp.ne.s32.totalorder %s227, %s241
      %p243 = scmp.eq.s32.totalorder %s39, 0
      %p244 = por %p242, %p243
      %s246 = sadd.s32 %s245, 1
      %p249 = scmp.eq.s32.totalorder %s33, 1
      %p250 = scmp.ne.s32.totalorder %s245, %s247
      %p251 = scmp.eq.s32.totalorder %s33, 0
      %p252 = por %p250, %p251
      %p253 = scmp.ne.s32.totalorder %s245, %s247
      %p254 = scmp.eq.s32.totalorder %s38, 1
      %p255 = por %p253, %p254
      %p256 = scmp.ne.s32.totalorder %s247, %s248
      %p257 = scmp.eq.s32.totalorder %s38, 0
      %p258 = por %p256, %p257
      %p259 = scmp.ne.s32.totalorder %s247, %s248
      %p260 = scmp.eq.s32.totalorder %s39, 1
      %p261 = por %p259, %p260
      %p263 = scmp.ne.s32.totalorder %s248, %s262
      %p264 = scmp.eq.s32.totalorder %s39, 0
      %p265 = por %p263, %p264
      %s267 = sadd.s32 %s266, 1
      %p270 = scmp.eq.s32.totalorder %s33, 1
      %p271 = scmp.ne.s32.totalorder %s266, %s268
      %p272 = scmp.eq.s32.totalorder %s33, 0
      %p273 = por %p271, %p272
      %p274 = scmp.ne.s32.totalorder %s266, %s268
      %p275 = scmp.eq.s32.totalorder %s38, 1
      %p276 = por %p274, %p275
      %p277 = scmp.ne.s32.totalorder %s268, %s269
      %p278 = scmp.eq.s32.totalorder %s38, 0
      %p279 = por %p277, %p278
      %p280 = scmp.ne.s32.totalorder %s268, %s269
      %p281 = scmp.eq.s32.totalorder %s39, 1
      %p282 = por %p280, %p281
      %p284 = scmp.ne.s32.totalorder %s269, %s283
      %p285 = scmp.eq.s32.totalorder %s39, 0
      %p286 = por %p284, %p285
      %s287 = ssub.s32 %s33, %s40
      %p288 = scmp.eq.s32.totalorder %s287, 0
      %s290 = sadd.s32 %s289, 1
      %s291 = scalar_select %p288, %s289, %s290
      %p294 = pneg %p288
      %p295 = scmp.eq.s32.totalorder %s33, 1
      %p296 = por %p294, %p295
      %p297 = scmp.ne.s32.totalorder %s289, %s292
      %p298 = scmp.eq.s32.totalorder %s33, 0
      %p299 = por %p297, %p298
      %p300 = scmp.ne.s32.totalorder %s289, %s292
      %p301 = scmp.eq.s32.totalorder %s38, 1
      %p302 = por %p300, %p301
      %p303 = scmp.ne.s32.totalorder %s292, %s293
      %p304 = scmp.eq.s32.totalorder %s38, 0
      %p305 = por %p303, %p304
      %p306 = scmp.ne.s32.totalorder %s292, %s293
      %p307 = scmp.eq.s32.totalorder %s39, 1
      %p308 = por %p306, %p307
      %p310 = scmp.ne.s32.totalorder %s293, %s309
      %p311 = scmp.eq.s32.totalorder %s39, 0
      %p312 = por %p310, %p311
      %s313 = ssub.s32 %s33, %s40
      %p314 = scmp.eq.s32.totalorder %s313, 0
      %s316 = sadd.s32 %s315, 1
      %s317 = scalar_select %p314, %s315, %s316
      %p320 = pneg %p314
      %p321 = scmp.eq.s32.totalorder %s33, 1
      %p322 = por %p320, %p321
      %p323 = scmp.ne.s32.totalorder %s315, %s318
      %p324 = scmp.eq.s32.totalorder %s33, 0
      %p325 = por %p323, %p324
      %p326 = scmp.ne.s32.totalorder %s315, %s318
      %p327 = scmp.eq.s32.totalorder %s38, 1
      %p328 = por %p326, %p327
      %p329 = scmp.ne.s32.totalorder %s318, %s319
      %p330 = scmp.eq.s32.totalorder %s38, 0
      %p331 = por %p329, %p330
      %p332 = scmp.ne.s32.totalorder %s318, %s319
      %p333 = scmp.eq.s32.totalorder %s39, 1
      %p334 = por %p332, %p333
      %p336 = scmp.ne.s32.totalorder %s319, %s335
      %p337 = scmp.eq.s32.totalorder %s39, 0
      %p338 = por %p336, %p337
      %p339 = scmp.le.s32.totalorder 1, %s33
      %p340 = scmp.lt.s32.totalorder %s33, 3
      %p341 = pnand %p339, %p340
      %p342 = pneg %p341
      // Predicated region
      $region9: #{tpu_custom_call.1} parent=5 // pred_check
        _
      $region10: #{tpu_custom_call.1} parent=5 // pred_check_branch
        %344 = sbr.rel (%p341) target = $region12
      $region11: #{tpu_custom_call.1} parent=5 // pred_region
        %s345 = ssub.s32 %s33, 1
        // Predicated region
        $region13: #{tpu_custom_call.1} parent=11 // pred_check
          %p346 = pneg %p132
        $region14: #{tpu_custom_call.1} parent=11 // pred_check_branch
          %348 = sbr.rel (%p346) target = $region16
        $region15: #{tpu_custom_call.1} parent=11 // pred_region
          %350 = vsyncadd [#allocation9], 0
          %s351 = sshll.u32 %s3, 4
          %s352 = int_to_ptr.hbm [resolvable:$true] %s351
          %s353 = sshll.u32 [#allocation8], 4
          %s354 = int_to_ptr.vmem [resolvable:$true] %s353
          %359 = dma.hbm_to_vmem [thread:$0]  %s352, 2048, %s354, [#allocation9], 128, 128, 8
        $region16: #{tpu_custom_call.1} parent=11 // pred_fallthru
          _
        // Predicated region
        $region17: #{tpu_custom_call.1} parent=11 // pred_check
          %p360 = pneg %p153
        $region18: #{tpu_custom_call.1} parent=11 // pred_check_branch
          %362 = sbr.rel (%p360) target = $region20
        $region19: #{tpu_custom_call.1} parent=11 // pred_region
          _
        $region20: #{tpu_custom_call.1} parent=11 // pred_fallthru
          _
        // Predicated region
        $region21: #{tpu_custom_call.1} parent=11 // pred_check
          %p363 = pneg %p174
        $region22: #{tpu_custom_call.1} parent=11 // pred_check_branch
          %365 = sbr.rel (%p363) target = $region24
        $region23: #{tpu_custom_call.1} parent=11 // pred_region
          %367 = vsyncadd [#allocation9], 0
          %s368 = sshll.u32 %s5, 4
          %s369 = int_to_ptr.hbm [resolvable:$true] %s368
          %s370 = sshll.u32 [#allocation10], 4
          %s371 = int_to_ptr.vmem [resolvable:$true] %s370
          %376 = dma.hbm_to_vmem [thread:$0]  %s369, 2048, %s371, [#allocation9], 128, 128, 8
        $region24: #{tpu_custom_call.1} parent=11 // pred_fallthru
          _
        // Predicated region
        $region25: #{tpu_custom_call.1} parent=11 // pred_check
          %p377 = pneg %p195
        $region26: #{tpu_custom_call.1} parent=11 // pred_check_branch
          %379 = sbr.rel (%p377) target = $region28
        $region27: #{tpu_custom_call.1} parent=11 // pred_region
          _
        $region28: #{tpu_custom_call.1} parent=11 // pred_fallthru
          _
        // Predicated region
        $region29: #{tpu_custom_call.1} parent=11 // pred_check
          %p380 = pneg %p216
        $region30: #{tpu_custom_call.1} parent=11 // pred_check_branch
          %382 = sbr.rel (%p380) target = $region32
        $region31: #{tpu_custom_call.1} parent=11 // pred_region
          %384 = vsyncadd [#allocation12], 0
          %s385 = sshll.u32 %s7, 4
          %s386 = int_to_ptr.hbm [resolvable:$true] %s385
          %s387 = sshll.u32 [#allocation11], 4
          %s388 = int_to_ptr.vmem [resolvable:$true] %s387
          %393 = dma.hbm_to_vmem [thread:$0]  %s386, 2048, %s388, [#allocation12], 128, 128, 8
        $region32: #{tpu_custom_call.1} parent=11 // pred_fallthru
          _
        // Predicated region
        $region33: #{tpu_custom_call.1} parent=11 // pred_check
          %p394 = pneg %p237
        $region34: #{tpu_custom_call.1} parent=11 // pred_check_branch
          %396 = sbr.rel (%p394) target = $region36
        $region35: #{tpu_custom_call.1} parent=11 // pred_region
          _
        $region36: #{tpu_custom_call.1} parent=11 // pred_fallthru
          _
        // Predicated region
        $region37: #{tpu_custom_call.1} parent=11 // pred_check
          %p397 = pneg %p258
        $region38: #{tpu_custom_call.1} parent=11 // pred_check_branch
          %399 = sbr.rel (%p397) target = $region40
        $region39: #{tpu_custom_call.1} parent=11 // pred_region
          %401 = vsyncadd [#allocation12], 0
          %s402 = sshll.u32 %s9, 4
          %s403 = int_to_ptr.hbm [resolvable:$true] %s402
          %s404 = sshll.u32 [#allocation13], 4
          %s405 = int_to_ptr.vmem [resolvable:$true] %s404
          %410 = dma.hbm_to_vmem [thread:$0]  %s403, 2048, %s405, [#allocation12], 128, 128, 8
        $region40: #{tpu_custom_call.1} parent=11 // pred_fallthru
          _
        // Predicated region
        $region41: #{tpu_custom_call.1} parent=11 // pred_check
          %p411 = pneg %p279
        $region42: #{tpu_custom_call.1} parent=11 // pred_check_branch
          %413 = sbr.rel (%p411) target = $region44
        $region43: #{tpu_custom_call.1} parent=11 // pred_region
          _
        $region44: #{tpu_custom_call.1} parent=11 // pred_fallthru
          _
      $region12: #{tpu_custom_call.1} parent=5 // pred_fallthru
        _
      %p414 = scmp.lt.s32.totalorder %s33, 2
      // Predicated region
      $region45: #{tpu_custom_call.1} parent=5 // pred_check
        %p415 = pneg %p414
      $region46: #{tpu_custom_call.1} parent=5 // pred_check_branch
        %417 = sbr.rel (%p415) target = $region48
      $region47: #{tpu_custom_call.1} parent=5 // pred_region
        // Predicated region
        $region49: #{tpu_custom_call.1} parent=47 // pred_check
          %p418 = pneg %p53
        $region50: #{tpu_custom_call.1} parent=47 // pred_check_branch
          %420 = sbr.rel (%p418) target = $region52
        $region51: #{tpu_custom_call.1} parent=47 // pred_region
          %s421 = sand.u32 %s43, 1
          %s422 = scalar_lea.sflag [#allocation3], %s421
          %s423 = sand.u32 %s43, 1
          %s424 = smul.addr %s423, 8
          %s425 = scalar_lea.vmem [#allocation2], %s424
          %427 = vsyncadd %s422, 0
          %s428 = smul.addr %s33, 8
          %s429 = scalar_lea.hbm %s0, %s428
          %s431 = sshll.u32 %s429, 4
          %s432 = int_to_ptr.hbm [resolvable:$true] %s431
          %s433 = sshll.u32 %s425, 4
          %s434 = int_to_ptr.vmem [resolvable:$true] %s433
          %436 = dma.hbm_to_vmem [thread:$0]  %s432, 128, %s434, %s422
        $region52: #{tpu_custom_call.1} parent=47 // pred_fallthru
          _
        // Predicated region
        $region53: #{tpu_custom_call.1} parent=47 // pred_check
          %p437 = pneg %p79
        $region54: #{tpu_custom_call.1} parent=47 // pred_check_branch
          %439 = sbr.rel (%p437) target = $region56
        $region55: #{tpu_custom_call.1} parent=47 // pred_region
          %s440 = sand.u32 %s33, 1
          %s441 = scalar_lea.sflag [#allocation6], %s440
          %s442 = sand.u32 %s69, 1
          %s443 = smul.addr %s442, 8
          %s444 = scalar_lea.vmem [#allocation5], %s443
          %446 = vsyncadd %s441, 0
          %s447 = smul.addr %s33, 8
          %s448 = scalar_lea.hbm %s1, %s447
          %s450 = sshll.u32 %s448, 4
          %s451 = int_to_ptr.hbm [resolvable:$true] %s450
          %s452 = sshll.u32 %s444, 4
          %s453 = int_to_ptr.vmem [resolvable:$true] %s452
          %455 = dma.hbm_to_vmem [thread:$0]  %s451, 128, %s453, %s441
        $region56: #{tpu_custom_call.1} parent=47 // pred_fallthru
          _
        // Predicated region
        $region57: #{tpu_custom_call.1} parent=47 // pred_check
          %p456 = pneg %p105
        $region58: #{tpu_custom_call.1} parent=47 // pred_check_branch
          %458 = sbr.rel (%p456) target = $region60
        $region59: #{tpu_custom_call.1} parent=47 // pred_region
          %s459 = sand.u32 %s33, 1
          %s460 = scalar_lea.sflag [#allocation6], %s459
          %s461 = sand.u32 %s95, 1
          %s462 = smul.addr %s461, 8
          %s463 = scalar_lea.vmem [#allocation7], %s462
          %465 = vsyncadd %s460, 0
          %s466 = smul.addr %s33, 8
          %s467 = scalar_lea.hbm %s2, %s466
          %s469 = sshll.u32 %s467, 4
          %s470 = int_to_ptr.hbm [resolvable:$true] %s469
          %s471 = sshll.u32 %s463, 4
          %s472 = int_to_ptr.vmem [resolvable:$true] %s471
          %474 = dma.hbm_to_vmem [thread:$0]  %s470, 128, %s472, %s460
        $region60: #{tpu_custom_call.1} parent=47 // pred_fallthru
          _
      $region48: #{tpu_custom_call.1} parent=5 // pred_fallthru
        _
      %p475 = scmp.le.s32.totalorder 1, %s33
      %p476 = scmp.lt.s32.totalorder %s33, 3
      %p477 = pnand %p475, %p476
      %p478 = pneg %p477
      // Predicated region
      $region61: #{tpu_custom_call.1} parent=5 // pred_check
        _
      $region62: #{tpu_custom_call.1} parent=5 // pred_check_branch
        %480 = sbr.rel (%p477) target = $region64
      $region63: #{tpu_custom_call.1} parent=5 // pred_region
        %s481 = ssub.s32 %s33, 1
        %s482 = sand.u32 %s46, 1
        %s483 = scalar_lea.sflag [#allocation3], %s482
        %s484 = sand.u32 %s46, 1
        %s485 = smul.addr %s484, 8
        %s486 = scalar_lea.vmem [#allocation2], %s485
        // Predicated region
        $region65: #{tpu_custom_call.1} parent=63 // pred_check
          %p487 = pneg %p59
        $region66: #{tpu_custom_call.1} parent=63 // pred_check_branch
          %489 = sbr.rel (%p487) target = $region68
        $region67: #{tpu_custom_call.1} parent=63 // pred_region
          %491 = dma.done %s483, 128
        $region68: #{tpu_custom_call.1} parent=63 // pred_fallthru
          _
        %s492 = sand.u32 %s38, 1
        %s493 = scalar_lea.sflag [#allocation6], %s492
        %s494 = sand.u32 %s72, 1
        %s495 = smul.addr %s494, 8
        %s496 = scalar_lea.vmem [#allocation5], %s495
        // Predicated region
        $region69: #{tpu_custom_call.1} parent=63 // pred_check
          %p497 = pneg %p85
        $region70: #{tpu_custom_call.1} parent=63 // pred_check_branch
          %499 = sbr.rel (%p497) target = $region72
        $region71: #{tpu_custom_call.1} parent=63 // pred_region
          %501 = dma.done %s493, 128
        $region72: #{tpu_custom_call.1} parent=63 // pred_fallthru
          _
        %s502 = sand.u32 %s38, 1
        %s503 = scalar_lea.sflag [#allocation6], %s502
        %s504 = sand.u32 %s98, 1
        %s505 = smul.addr %s504, 8
        %s506 = scalar_lea.vmem [#allocation7], %s505
        // Predicated region
        $region73: #{tpu_custom_call.1} parent=63 // pred_check
          %p507 = pneg %p111
        $region74: #{tpu_custom_call.1} parent=63 // pred_check_branch
          %509 = sbr.rel (%p507) target = $region76
        $region75: #{tpu_custom_call.1} parent=63 // pred_region
          %511 = dma.done %s503, 128
        $region76: #{tpu_custom_call.1} parent=63 // pred_fallthru
          _
        // Predicated region
        $region77: #{tpu_custom_call.1} parent=63 // pred_check
          %p512 = pneg %p132
        $region78: #{tpu_custom_call.1} parent=63 // pred_check_branch
          %514 = sbr.rel (%p512) target = $region80
        $region79: #{tpu_custom_call.1} parent=63 // pred_region
          %516 = dma.done [#allocation9], 2048
        $region80: #{tpu_custom_call.1} parent=63 // pred_fallthru
          _
        // Predicated region
        $region81: #{tpu_custom_call.1} parent=63 // pred_check
          %p517 = pneg %p174
        $region82: #{tpu_custom_call.1} parent=63 // pred_check_branch
          %519 = sbr.rel (%p517) target = $region84
        $region83: #{tpu_custom_call.1} parent=63 // pred_region
          %521 = dma.done [#allocation9], 2048
        $region84: #{tpu_custom_call.1} parent=63 // pred_fallthru
          _
        // Predicated region
        $region85: #{tpu_custom_call.1} parent=63 // pred_check
          %p522 = pneg %p216
        $region86: #{tpu_custom_call.1} parent=63 // pred_check_branch
          %524 = sbr.rel (%p522) target = $region88
        $region87: #{tpu_custom_call.1} parent=63 // pred_region
          %526 = dma.done [#allocation12], 2048
        $region88: #{tpu_custom_call.1} parent=63 // pred_fallthru
          _
        // Predicated region
        $region89: #{tpu_custom_call.1} parent=63 // pred_check
          %p527 = pneg %p258
        $region90: #{tpu_custom_call.1} parent=63 // pred_check_branch
          %529 = sbr.rel (%p527) target = $region92
        $region91: #{tpu_custom_call.1} parent=63 // pred_region
          %531 = dma.done [#allocation12], 2048
        $region92: #{tpu_custom_call.1} parent=63 // pred_fallthru
          _
        %s532 = sand.u32 %s46, 1
        %s533 = scalar_lea.sflag [#allocation3], %s532
        %s534 = sand.u32 %s46, 1
        %s535 = smul.addr %s534, 8
        %s536 = scalar_lea.vmem [#allocation2], %s535
        %p537 = pneg %p59
        %p538 = pneg %p56
        %s539 = sand.u32 %s38, 1
        %s540 = scalar_lea.sflag [#allocation6], %s539
        %s541 = sand.u32 %s72, 1
        %s542 = smul.addr %s541, 8
        %s543 = scalar_lea.vmem [#allocation5], %s542
        %p544 = pneg %p85
        %p545 = pneg %p82
        %s546 = sand.u32 %s38, 1
        %s547 = scalar_lea.sflag [#allocation6], %s546
        %s548 = sand.u32 %s98, 1
        %s549 = smul.addr %s548, 8
        %s550 = scalar_lea.vmem [#allocation7], %s549
        %p551 = pneg %p111
        %p552 = pneg %p108
        %p553 = pneg %p132
        %p554 = pneg %p129
        %p555 = pneg %p153
        %p556 = pneg %p150
        %p557 = pneg %p174
        %p558 = pneg %p171
        %p559 = pneg %p195
        %p560 = pneg %p192
        %p561 = pneg %p216
        %p562 = pneg %p213
        %p563 = pneg %p237
        %p564 = pneg %p234
        %p565 = pneg %p258
        %p566 = pneg %p255
        %p567 = pneg %p279
        %p568 = pneg %p276
        %p569 = pneg %p305
        %p570 = pneg %p302
        %s571 = sand.u32 %s292, 1
        %s572 = scalar_lea.sflag [#allocation4], %s571
        %s573 = sand.u32 %s292, 1
        %s574 = smul.addr %s573, 8
        %s575 = scalar_lea.vmem [#allocation14], %s574
        %p576 = pneg %p331
        %p577 = pneg %p328
        %s578 = sand.u32 %s318, 1
        %s579 = scalar_lea.sflag [#allocation16], %s578
        %s580 = sand.u32 %s318, 1
        %s581 = smul.addr %s580, 32
        %s582 = scalar_lea.vmem [#allocation15], %s581
        %v583 = vld [vmem:[%s486] sm:$0xff]
        %v584 = vld [vmem:[%s496] sm:$0xff]
        %v585 = vld [vmem:[%s506] sm:$0xff]
        %v586 = vld [vmem:[#allocation8] sm:$0xff]
        %v587 = vld [vmem:[#allocation8 + $0x8] sm:$0xff]
        %v588 = vld [vmem:[#allocation8 + $0x10] sm:$0xff]
        %v589 = vld [vmem:[#allocation8 + $0x18] sm:$0xff]
        %v590 = vld [vmem:[#allocation8 + $0x20] sm:$0xff]
        %v591 = vld [vmem:[#allocation8 + $0x28] sm:$0xff]
        %v592 = vld [vmem:[#allocation8 + $0x30] sm:$0xff]
        %v593 = vld [vmem:[#allocation8 + $0x38] sm:$0xff]
        %v594 = vld [vmem:[#allocation8 + $0x40] sm:$0xff]
        %v595 = vld [vmem:[#allocation8 + $0x48] sm:$0xff]
        %v596 = vld [vmem:[#allocation8 + $0x50] sm:$0xff]
        %v597 = vld [vmem:[#allocation8 + $0x58] sm:$0xff]
        %v598 = vld [vmem:[#allocation8 + $0x60] sm:$0xff]
        %v599 = vld [vmem:[#allocation8 + $0x68] sm:$0xff]
        %v600 = vld [vmem:[#allocation8 + $0x70] sm:$0xff]
        %v601 = vld [vmem:[#allocation8 + $0x78] sm:$0xff]
        %v602 = vld [vmem:[%s4] sm:$0x1]
        %v604 = vperm.slane %v602, 0
        %606 = vmatpush.msra.mxu0 %v601
        %607 = vmatpush.msra.mxu0 %v600
        %608 = vmatpush.msra.mxu0 %v599
        %609 = vmatpush.msra.mxu0 %v598
        %610 = vmatpush.msra.mxu0 %v597
        %611 = vmatpush.msra.mxu0 %v596
        %612 = vmatpush.msra.mxu0 %v595
        %613 = vmatpush.msra.mxu0 %v594
        %614 = vmatpush.msra.mxu0 %v593
        %615 = vmatpush.msra.mxu0 %v592
        %616 = vmatpush.msra.mxu0 %v591
        %617 = vmatpush.msra.mxu0 %v590
        %618 = vmatpush.msra.mxu0 %v589
        %619 = vmatpush.msra.mxu0 %v588
        %620 = vmatpush.msra.mxu0 %v587
        %621 = vmatpush.msra.mxu0 %v586
        %622 = vmatmul.f32.gmra.mxu0 %v583
        %v623 = vpop.f32.mrf.mxu0
        %v624 = vadd.f32 %v604, %v623
        %625 = vdwg.mxu0
        %v626 = vld [vmem:[#allocation10] sm:$0xff]
        %v627 = vld [vmem:[#allocation10 + $0x8] sm:$0xff]
        %v628 = vld [vmem:[#allocation10 + $0x10] sm:$0xff]
        %v629 = vld [vmem:[#allocation10 + $0x18] sm:$0xff]
        %v630 = vld [vmem:[#allocation10 + $0x20] sm:$0xff]
        %v631 = vld [vmem:[#allocation10 + $0x28] sm:$0xff]
        %v632 = vld [vmem:[#allocation10 + $0x30] sm:$0xff]
        %v633 = vld [vmem:[#allocation10 + $0x38] sm:$0xff]
        %v634 = vld [vmem:[#allocation10 + $0x40] sm:$0xff]
        %v635 = vld [vmem:[#allocation10 + $0x48] sm:$0xff]
        %v636 = vld [vmem:[#allocation10 + $0x50] sm:$0xff]
        %v637 = vld [vmem:[#allocation10 + $0x58] sm:$0xff]
        %v638 = vld [vmem:[#allocation10 + $0x60] sm:$0xff]
        %v639 = vld [vmem:[#allocation10 + $0x68] sm:$0xff]
        %v640 = vld [vmem:[#allocation10 + $0x70] sm:$0xff]
        %v641 = vld [vmem:[#allocation10 + $0x78] sm:$0xff]
        %v642 = vld [vmem:[%s6] sm:$0x1]
        %v644 = vperm.slane %v642, 0
        %646 = vmatpush.msra.mxu0 %v641
        %647 = vmatpush.msra.mxu0 %v640
        %648 = vmatpush.msra.mxu0 %v639
        %649 = vmatpush.msra.mxu0 %v638
        %650 = vmatpush.msra.mxu0 %v637
        %651 = vmatpush.msra.mxu0 %v636
        %652 = vmatpush.msra.mxu0 %v635
        %653 = vmatpush.msra.mxu0 %v634
        %654 = vmatpush.msra.mxu0 %v633
        %655 = vmatpush.msra.mxu0 %v632
        %656 = vmatpush.msra.mxu0 %v631
        %657 = vmatpush.msra.mxu0 %v630
        %658 = vmatpush.msra.mxu0 %v629
        %659 = vmatpush.msra.mxu0 %v628
        %660 = vmatpush.msra.mxu0 %v627
        %661 = vmatpush.msra.mxu0 %v626
        %662 = vmatmul.f32.gmra.mxu0 %v584
        %v663 = vpop.f32.mrf.mxu0
        %v664 = vadd.f32 %v644, %v663
        %665 = vdwg.mxu0
        %v666 = vld [vmem:[#allocation11] sm:$0xff]
        %v667 = vld [vmem:[#allocation11 + $0x8] sm:$0xff]
        %v668 = vld [vmem:[#allocation11 + $0x10] sm:$0xff]
        %v669 = vld [vmem:[#allocation11 + $0x18] sm:$0xff]
        %v670 = vld [vmem:[#allocation11 + $0x20] sm:$0xff]
        %v671 = vld [vmem:[#allocation11 + $0x28] sm:$0xff]
        %v672 = vld [vmem:[#allocation11 + $0x30] sm:$0xff]
        %v673 = vld [vmem:[#allocation11 + $0x38] sm:$0xff]
        %v674 = vld [vmem:[#allocation11 + $0x40] sm:$0xff]
        %v675 = vld [vmem:[#allocation11 + $0x48] sm:$0xff]
        %v676 = vld [vmem:[#allocation11 + $0x50] sm:$0xff]
        %v677 = vld [vmem:[#allocation11 + $0x58] sm:$0xff]
        %v678 = vld [vmem:[#allocation11 + $0x60] sm:$0xff]
        %v679 = vld [vmem:[#allocation11 + $0x68] sm:$0xff]
        %v680 = vld [vmem:[#allocation11 + $0x70] sm:$0xff]
        %v681 = vld [vmem:[#allocation11 + $0x78] sm:$0xff]
        %v682 = vld [vmem:[%s8] sm:$0x1]
        %v684 = vperm.slane %v682, 0
        %686 = vmatpush.msra.mxu0 %v681
        %687 = vmatpush.msra.mxu0 %v680
        %688 = vmatpush.msra.mxu0 %v679
        %689 = vmatpush.msra.mxu0 %v678
        %690 = vmatpush.msra.mxu0 %v677
        %691 = vmatpush.msra.mxu0 %v676
        %692 = vmatpush.msra.mxu0 %v675
        %693 = vmatpush.msra.mxu0 %v674
        %694 = vmatpush.msra.mxu0 %v673
        %695 = vmatpush.msra.mxu0 %v672
        %696 = vmatpush.msra.mxu0 %v671
        %697 = vmatpush.msra.mxu0 %v670
        %698 = vmatpush.msra.mxu0 %v669
        %699 = vmatpush.msra.mxu0 %v668
        %700 = vmatpush.msra.mxu0 %v667
        %701 = vmatpush.msra.mxu0 %v666
        %702 = vmatmul.f32.gmra.mxu0 %v585
        %v703 = vpop.f32.mrf.mxu0
        %v704 = vadd.f32 %v684, %v703
        %705 = vdwg.mxu0
        %vm706 = vcmask 261120
        %v708 = vsel %vm706, %v624, 0
        %v711 = vsel %vm706, %v664, 0
        %713 = vmatpush.xpose.msra.mxu0 0.0
        %714 = vmatpush.xpose.msra.mxu0 0.0
        %715 = vmatpush.xpose.msra.mxu0 0.0
        %716 = vmatpush.xpose.msra.mxu0 0.0
        %717 = vmatpush.xpose.msra.mxu0 0.0
        %718 = vmatpush.xpose.msra.mxu0 0.0
        %719 = vmatpush.xpose.msra.mxu0 0.0
        %720 = vmatpush.xpose.msra.mxu0 0.0
        %721 = vmatpush.xpose.msra.mxu0 0.0
        %722 = vmatpush.xpose.msra.mxu0 0.0
        %723 = vmatpush.xpose.msra.mxu0 0.0
        %724 = vmatpush.xpose.msra.mxu0 0.0
        %725 = vmatpush.xpose.msra.mxu0 0.0
        %726 = vmatpush.xpose.msra.mxu0 0.0
        %727 = vmatpush.xpose.msra.mxu0 0.0
        %728 = vmatpush.xpose.msra.mxu0 %v711
        %729 = vmatmul.f32.gmra.mxu0 %v708
        %v730 = vpop.f32.mrf.mxu0
        %v731 = vadd.f32 0.0, %v730
        %732 = vdwg.mxu0
        %v733 = vmul.f32 %v731, 0.17677669
        %vm734 = vcmask 64512
        %v735 = vsel %vm734, %v733, -inf
        %736 = vmax.xlane.f32.xlu0 %v735
        %v737 = vpop.xlane.xlu0 %736
        %v738 = vsub.f32 %v733, %v737
        %v739 = vmul.f32 %v738, 1.442695
        %v740 = vpow.pop %v739
        %v741 = vsel %vm734, %v740, 0.0
        %742 = vadd.xlane.f32.xlu0 %v741
        %v743 = vpop.xlane.xlu0 %742
        %v744 = vrcp.pop %v743
        %v745 = vmul.f32 %v743, %v744
        %v746 = vsub.f32 1.0, %v745
        %v747 = vmul.f32 %v744, %v746
        %v748 = vadd.f32 %v744, %v747
        %vm749 = vweird.f32 %v743
        %vm750 = vweird.f32 %v744
        %vm751 = vmor %vm749, %vm750
        %v752 = vsel %vm751, %v744, %v748
        %v753 = vand.u32 2147483647, %v743
        %vm754 = vcmp.eq.f32.partialorder %v753, 8.507059e+37
        %v755 = vand.u32 %v743, 2147483648
        %v756 = vor.u32 1.1754944e-38, %v755
        %v757 = vsel %vm754, %v756, %v752
        %v758 = vmul.f32 %v740, %v757
        %759 = vst.msk [vmem:[%s582] sm:$0xff] %vm734, %v758
        %v761 = vsel %vm734, %v758, 0
        %763 = vmatpush.msra.mxu0 0.0
        %764 = vmatpush.msra.mxu0 0.0
        %765 = vmatpush.msra.mxu0 0.0
        %766 = vmatpush.msra.mxu0 0.0
        %767 = vmatpush.msra.mxu0 0.0
        %768 = vmatpush.msra.mxu0 0.0
        %769 = vmatpush.msra.mxu0 0.0
        %770 = vmatpush.msra.mxu0 0.0
        %771 = vmatpush.msra.mxu0 0.0
        %772 = vmatpush.msra.mxu0 0.0
        %773 = vmatpush.msra.mxu0 0.0
        %774 = vmatpush.msra.mxu0 0.0
        %775 = vmatpush.msra.mxu0 0.0
        %776 = vmatpush.msra.mxu0 0.0
        %777 = vmatpush.msra.mxu0 0.0
        %778 = vmatpush.msra.mxu0 %v704
        %779 = vmatmul.f32.gmra.mxu0 %v761
        %v780 = vpop.f32.mrf.mxu0
        %v781 = vadd.f32 0.0, %v780
        %782 = vdwg.mxu0
        %783 = vrot.lane.b32.xlu0 %v624, 96
        %v784 = vpop.permute.xlu0 %783
        %785 = vrot.lane.b32.xlu0 %v664, 96
        %v786 = vpop.permute.xlu0 %785
        %v787 = vsel %vm706, %v784, 0
        %v789 = vsel %vm706, %v786, 0
        %791 = vmatpush.xpose.msra.mxu0 0.0
        %792 = vmatpush.xpose.msra.mxu0 0.0
        %793 = vmatpush.xpose.msra.mxu0 0.0
        %794 = vmatpush.xpose.msra.mxu0 0.0
        %795 = vmatpush.xpose.msra.mxu0 0.0
        %796 = vmatpush.xpose.msra.mxu0 0.0
        %797 = vmatpush.xpose.msra.mxu0 0.0
        %798 = vmatpush.xpose.msra.mxu0 0.0
        %799 = vmatpush.xpose.msra.mxu0 0.0
        %800 = vmatpush.xpose.msra.mxu0 0.0
        %801 = vmatpush.xpose.msra.mxu0 0.0
        %802 = vmatpush.xpose.msra.mxu0 0.0
        %803 = vmatpush.xpose.msra.mxu0 0.0
        %804 = vmatpush.xpose.msra.mxu0 0.0
        %805 = vmatpush.xpose.msra.mxu0 0.0
        %806 = vmatpush.xpose.msra.mxu0 %v789
        %807 = vmatmul.f32.gmra.mxu0 %v787
        %v808 = vpop.f32.mrf.mxu0
        %v809 = vadd.f32 0.0, %v808
        %810 = vdwg.mxu0
        %v811 = vmul.f32 %v809, 0.17677669
        %v812 = vsel %vm734, %v811, -inf
        %813 = vmax.xlane.f32.xlu0 %v812
        %v814 = vpop.xlane.xlu0 %813
        %v815 = vsub.f32 %v811, %v814
        %v816 = vmul.f32 %v815, 1.442695
        %v817 = vpow.pop %v816
        %v818 = vsel %vm734, %v817, 0.0
        %819 = vadd.xlane.f32.xlu0 %v818
        %v820 = vpop.xlane.xlu0 %819
        %v821 = vrcp.pop %v820
        %v822 = vmul.f32 %v820, %v821
        %v823 = vsub.f32 1.0, %v822
        %v824 = vmul.f32 %v821, %v823
        %v825 = vadd.f32 %v821, %v824
        %vm826 = vweird.f32 %v820
        %vm827 = vweird.f32 %v821
        %vm828 = vmor %vm826, %vm827
        %v829 = vsel %vm828, %v821, %v825
        %v830 = vand.u32 2147483647, %v820
        %vm831 = vcmp.eq.f32.partialorder %v830, 8.507059e+37
        %v832 = vand.u32 %v820, 2147483648
        %v833 = vor.u32 1.1754944e-38, %v832
        %v834 = vsel %vm831, %v833, %v829
        %v835 = vmul.f32 %v817, %v834
        %s836 = scalar_lea.vmem %s582, 8 [#allocation15]
        %837 = vst.msk [vmem:[%s836] sm:$0xff] %vm734, %v835
        %839 = vrot.lane.b32.xlu0 %v704, 96
        %v840 = vpop.permute.xlu0 %839
        %v843 = vsel %vm734, %v835, 0
        %845 = vmatpush.msra.mxu0 0.0
        %846 = vmatpush.msra.mxu0 0.0
        %847 = vmatpush.msra.mxu0 0.0
        %848 = vmatpush.msra.mxu0 0.0
        %849 = vmatpush.msra.mxu0 0.0
        %850 = vmatpush.msra.mxu0 0.0
        %851 = vmatpush.msra.mxu0 0.0
        %852 = vmatpush.msra.mxu0 0.0
        %853 = vmatpush.msra.mxu0 0.0
        %854 = vmatpush.msra.mxu0 0.0
        %855 = vmatpush.msra.mxu0 0.0
        %856 = vmatpush.msra.mxu0 0.0
        %857 = vmatpush.msra.mxu0 0.0
        %858 = vmatpush.msra.mxu0 0.0
        %859 = vmatpush.msra.mxu0 0.0
        %860 = vmatpush.msra.mxu0 %v840
        %861 = vmatmul.f32.gmra.mxu0 %v843
        %v862 = vpop.f32.mrf.mxu0
        %v863 = vadd.f32 0.0, %v862
        %864 = vdwg.mxu0
        %865 = vrot.lane.b32.xlu0 %v624, 64
        %v866 = vpop.permute.xlu0 %865
        %867 = vrot.lane.b32.xlu0 %v664, 64
        %v868 = vpop.permute.xlu0 %867
        %v869 = vsel %vm706, %v866, 0
        %v871 = vsel %vm706, %v868, 0
        %873 = vmatpush.xpose.msra.mxu0 0.0
        %874 = vmatpush.xpose.msra.mxu0 0.0
        %875 = vmatpush.xpose.msra.mxu0 0.0
        %876 = vmatpush.xpose.msra.mxu0 0.0
        %877 = vmatpush.xpose.msra.mxu0 0.0
        %878 = vmatpush.xpose.msra.mxu0 0.0
        %879 = vmatpush.xpose.msra.mxu0 0.0
        %880 = vmatpush.xpose.msra.mxu0 0.0
        %881 = vmatpush.xpose.msra.mxu0 0.0
        %882 = vmatpush.xpose.msra.mxu0 0.0
        %883 = vmatpush.xpose.msra.mxu0 0.0
        %884 = vmatpush.xpose.msra.mxu0 0.0
        %885 = vmatpush.xpose.msra.mxu0 0.0
        %886 = vmatpush.xpose.msra.mxu0 0.0
        %887 = vmatpush.xpose.msra.mxu0 0.0
        %888 = vmatpush.xpose.msra.mxu0 %v871
        %889 = vmatmul.f32.gmra.mxu0 %v869
        %v890 = vpop.f32.mrf.mxu0
        %v891 = vadd.f32 0.0, %v890
        %892 = vdwg.mxu0
        %v893 = vmul.f32 %v891, 0.17677669
        %v894 = vsel %vm734, %v893, -inf
        %895 = vmax.xlane.f32.xlu0 %v894
        %v896 = vpop.xlane.xlu0 %895
        %v897 = vsub.f32 %v893, %v896
        %v898 = vmul.f32 %v897, 1.442695
        %v899 = vpow.pop %v898
        %v900 = vsel %vm734, %v899, 0.0
        %901 = vadd.xlane.f32.xlu0 %v900
        %v902 = vpop.xlane.xlu0 %901
        %v903 = vrcp.pop %v902
        %v904 = vmul.f32 %v902, %v903
        %v905 = vsub.f32 1.0, %v904
        %v906 = vmul.f32 %v903, %v905
        %v907 = vadd.f32 %v903, %v906
        %vm908 = vweird.f32 %v902
        %vm909 = vweird.f32 %v903
        %vm910 = vmor %vm908, %vm909
        %v911 = vsel %vm910, %v903, %v907
        %v912 = vand.u32 2147483647, %v902
        %vm913 = vcmp.eq.f32.partialorder %v912, 8.507059e+37
        %v914 = vand.u32 %v902, 2147483648
        %v915 = vor.u32 1.1754944e-38, %v914
        %v916 = vsel %vm913, %v915, %v911
        %v917 = vmul.f32 %v899, %v916
        %s918 = scalar_lea.vmem %s582, 16 [#allocation15]
        %919 = vst.msk [vmem:[%s918] sm:$0xff] %vm734, %v917
        %920 = vrot.lane.b32.xlu0 %v704, 64
        %v921 = vpop.permute.xlu0 %920
        %v924 = vsel %vm734, %v917, 0
        %926 = vmatpush.msra.mxu0 0.0
        %927 = vmatpush.msra.mxu0 0.0
        %928 = vmatpush.msra.mxu0 0.0
        %929 = vmatpush.msra.mxu0 0.0
        %930 = vmatpush.msra.mxu0 0.0
        %931 = vmatpush.msra.mxu0 0.0
        %932 = vmatpush.msra.mxu0 0.0
        %933 = vmatpush.msra.mxu0 0.0
        %934 = vmatpush.msra.mxu0 0.0
        %935 = vmatpush.msra.mxu0 0.0
        %936 = vmatpush.msra.mxu0 0.0
        %937 = vmatpush.msra.mxu0 0.0
        %938 = vmatpush.msra.mxu0 0.0
        %939 = vmatpush.msra.mxu0 0.0
        %940 = vmatpush.msra.mxu0 0.0
        %941 = vmatpush.msra.mxu0 %v921
        %942 = vmatmul.f32.gmra.mxu0 %v924
        %v943 = vpop.f32.mrf.mxu0
        %v944 = vadd.f32 0.0, %v943
        %945 = vdwg.mxu0
        %946 = vrot.lane.b32.xlu0 %v624, 32
        %v947 = vpop.permute.xlu0 %946
        %948 = vrot.lane.b32.xlu0 %v664, 32
        %v949 = vpop.permute.xlu0 %948
        %v950 = vsel %vm706, %v947, 0
        %v952 = vsel %vm706, %v949, 0
        %954 = vmatpush.xpose.msra.mxu0 0.0
        %955 = vmatpush.xpose.msra.mxu0 0.0
        %956 = vmatpush.xpose.msra.mxu0 0.0
        %957 = vmatpush.xpose.msra.mxu0 0.0
        %958 = vmatpush.xpose.msra.mxu0 0.0
        %959 = vmatpush.xpose.msra.mxu0 0.0
        %960 = vmatpush.xpose.msra.mxu0 0.0
        %961 = vmatpush.xpose.msra.mxu0 0.0
        %962 = vmatpush.xpose.msra.mxu0 0.0
        %963 = vmatpush.xpose.msra.mxu0 0.0
        %964 = vmatpush.xpose.msra.mxu0 0.0
        %965 = vmatpush.xpose.msra.mxu0 0.0
        %966 = vmatpush.xpose.msra.mxu0 0.0
        %967 = vmatpush.xpose.msra.mxu0 0.0
        %968 = vmatpush.xpose.msra.mxu0 0.0
        %969 = vmatpush.xpose.msra.mxu0 %v952
        %970 = vmatmul.f32.gmra.mxu0 %v950
        %v971 = vpop.f32.mrf.mxu0
        %v972 = vadd.f32 0.0, %v971
        %973 = vdwg.mxu0
        %v974 = vmul.f32 %v972, 0.17677669
        %v975 = vsel %vm734, %v974, -inf
        %976 = vmax.xlane.f32.xlu0 %v975
        %v977 = vpop.xlane.xlu0 %976
        %v978 = vsub.f32 %v974, %v977
        %v979 = vmul.f32 %v978, 1.442695
        %v980 = vpow.pop %v979
        %v981 = vsel %vm734, %v980, 0.0
        %982 = vadd.xlane.f32.xlu0 %v981
        %v983 = vpop.xlane.xlu0 %982
        %v984 = vrcp.pop %v983
        %v985 = vmul.f32 %v983, %v984
        %v986 = vsub.f32 1.0, %v985
        %v987 = vmul.f32 %v984, %v986
        %v988 = vadd.f32 %v984, %v987
        %vm989 = vweird.f32 %v983
        %vm990 = vweird.f32 %v984
        %vm991 = vmor %vm989, %vm990
        %v992 = vsel %vm991, %v984, %v988
        %v993 = vand.u32 2147483647, %v983
        %vm994 = vcmp.eq.f32.partialorder %v993, 8.507059e+37
        %v995 = vand.u32 %v983, 2147483648
        %v996 = vor.u32 1.1754944e-38, %v995
        %v997 = vsel %vm994, %v996, %v992
        %v998 = vmul.f32 %v980, %v997
        %s999 = scalar_lea.vmem %s582, 24 [#allocation15]
        %1000 = vst.msk [vmem:[%s999] sm:$0xff] %vm734, %v998
        %1001 = vrot.lane.b32.xlu0 %v704, 32
        %v1002 = vpop.permute.xlu0 %1001
        %v1005 = vsel %vm734, %v998, 0
        %1007 = vmatpush.msra.mxu0 0.0
        %1008 = vmatpush.msra.mxu0 0.0
        %1009 = vmatpush.msra.mxu0 0.0
        %1010 = vmatpush.msra.mxu0 0.0
        %1011 = vmatpush.msra.mxu0 0.0
        %1012 = vmatpush.msra.mxu0 0.0
        %1013 = vmatpush.msra.mxu0 0.0
        %1014 = vmatpush.msra.mxu0 0.0
        %1015 = vmatpush.msra.mxu0 0.0
        %1016 = vmatpush.msra.mxu0 0.0
        %1017 = vmatpush.msra.mxu0 0.0
        %1018 = vmatpush.msra.mxu0 0.0
        %1019 = vmatpush.msra.mxu0 0.0
        %1020 = vmatpush.msra.mxu0 0.0
        %1021 = vmatpush.msra.mxu0 0.0
        %1022 = vmatpush.msra.mxu0 %v1002
        %1023 = vmatmul.f32.gmra.mxu0 %v1005
        %v1024 = vpop.f32.mrf.mxu0
        %v1025 = vadd.f32 0.0, %v1024
        %1026 = vdwg.mxu0
        %1028 = vrot.lane.b32.xlu0 %v863, 32
        %v1029 = vpop.permute.xlu0 %1028
        %1032 = vrot.lane.b32.xlu0 %v944, 64
        %v1033 = vpop.permute.xlu0 %1032
        %1036 = vrot.lane.b32.xlu0 %v1025, 96
        %v1037 = vpop.permute.xlu0 %1036
        %v1039 = vsel %vm706, %v781, %v1029
        %vm1040 = vcmask 523264
        %v1041 = vsel %vm1040, %v1039, %v1033
        %vm1042 = vcmask 785408
        %v1043 = vsel %vm1042, %v1041, %v1037
        %v1044 = vld [vmem:[#allocation13] sm:$0xff]
        %v1045 = vld [vmem:[#allocation13 + $0x8] sm:$0xff]
        %v1046 = vld [vmem:[#allocation13 + $0x10] sm:$0xff]
        %v1047 = vld [vmem:[#allocation13 + $0x18] sm:$0xff]
        %v1048 = vld [vmem:[#allocation13 + $0x20] sm:$0xff]
        %v1049 = vld [vmem:[#allocation13 + $0x28] sm:$0xff]
        %v1050 = vld [vmem:[#allocation13 + $0x30] sm:$0xff]
        %v1051 = vld [vmem:[#allocation13 + $0x38] sm:$0xff]
        %v1052 = vld [vmem:[#allocation13 + $0x40] sm:$0xff]
        %v1053 = vld [vmem:[#allocation13 + $0x48] sm:$0xff]
        %v1054 = vld [vmem:[#allocation13 + $0x50] sm:$0xff]
        %v1055 = vld [vmem:[#allocation13 + $0x58] sm:$0xff]
        %v1056 = vld [vmem:[#allocation13 + $0x60] sm:$0xff]
        %v1057 = vld [vmem:[#allocation13 + $0x68] sm:$0xff]
        %v1058 = vld [vmem:[#allocation13 + $0x70] sm:$0xff]
        %v1059 = vld [vmem:[#allocation13 + $0x78] sm:$0xff]
        %v1060 = vld [vmem:[%s10] sm:$0x1]
        %v1062 = vperm.slane %v1060, 0
        %1064 = vmatpush.msra.mxu0 %v1059
        %1065 = vmatpush.msra.mxu0 %v1058
        %1066 = vmatpush.msra.mxu0 %v1057
        %1067 = vmatpush.msra.mxu0 %v1056
        %1068 = vmatpush.msra.mxu0 %v1055
        %1069 = vmatpush.msra.mxu0 %v1054
        %1070 = vmatpush.msra.mxu0 %v1053
        %1071 = vmatpush.msra.mxu0 %v1052
        %1072 = vmatpush.msra.mxu0 %v1051
        %1073 = vmatpush.msra.mxu0 %v1050
        %1074 = vmatpush.msra.mxu0 %v1049
        %1075 = vmatpush.msra.mxu0 %v1048
        %1076 = vmatpush.msra.mxu0 %v1047
        %1077 = vmatpush.msra.mxu0 %v1046
        %1078 = vmatpush.msra.mxu0 %v1045
        %1079 = vmatpush.msra.mxu0 %v1044
        %1080 = vmatmul.f32.gmra.mxu0 %v1043
        %v1081 = vpop.f32.mrf.mxu0
        %v1082 = vadd.f32 %v1062, %v1081
        %1083 = vdwg.mxu0
        %1084 = vst [vmem:[%s575] sm:$0xff] %v1082
        %s1085 = sand.u32 %s292, 1
        %s1086 = scalar_lea.sflag [#allocation4], %s1085
        %s1087 = sand.u32 %s292, 1
        %s1088 = smul.addr %s1087, 8
        %s1089 = scalar_lea.vmem [#allocation14], %s1088
        %s1090 = sand.u32 %s318, 1
        %s1091 = scalar_lea.sflag [#allocation16], %s1090
        %s1092 = sand.u32 %s318, 1
        %s1093 = smul.addr %s1092, 32
        %s1094 = scalar_lea.vmem [#allocation15], %s1093
        // Predicated region
        $region93: #{tpu_custom_call.1} parent=63 // pred_check
          %p1095 = pneg %p302
        $region94: #{tpu_custom_call.1} parent=63 // pred_check_branch
          %1097 = sbr.rel (%p1095) target = $region96
        $region95: #{tpu_custom_call.1} parent=63 // pred_region
          %1099 = vsyncadd %s1086, 0
          %s1100 = smul.addr %s38, 8
          %s1101 = scalar_lea.hbm %s11, %s1100
          %s1103 = sshll.u32 %s1089, 4
          %s1104 = int_to_ptr.vmem [resolvable:$true] %s1103
          %s1105 = sshll.u32 %s1101, 4
          %s1106 = int_to_ptr.hbm [resolvable:$true] %s1105
          %1108 = dma.vmem_to_hbm [thread:$0]  %s1104, 128, %s1106, %s1086
        $region96: #{tpu_custom_call.1} parent=63 // pred_fallthru
          _
        // Predicated region
        $region97: #{tpu_custom_call.1} parent=63 // pred_check
          %p1109 = pneg %p328
        $region98: #{tpu_custom_call.1} parent=63 // pred_check_branch
          %1111 = sbr.rel (%p1109) target = $region100
        $region99: #{tpu_custom_call.1} parent=63 // pred_region
          %1113 = vsyncadd %s1091, 0
          %s1114 = smul.addr %s38, 4
          %s1115 = smul.addr %s1114, 8
          %s1116 = scalar_lea.hbm %s12, %s1115
          %s1117 = sshll.u32 %s1094, 4
          %s1118 = int_to_ptr.vmem [resolvable:$true] %s1117
          %s1119 = sshll.u32 %s1116, 4
          %s1120 = int_to_ptr.hbm [resolvable:$true] %s1119
          %1125 = dma.vmem_to_hbm [thread:$0]  %s1118, 512, %s1120, %s1091, 128, 128, 8
        $region100: #{tpu_custom_call.1} parent=63 // pred_fallthru
          _
      $region64: #{tpu_custom_call.1} parent=5 // pred_fallthru
        _
      %p1126 = scmp.le.s32.totalorder 2, %s33
      // Predicated region
      $region101: #{tpu_custom_call.1} parent=5 // pred_check
        %p1127 = pneg %p1126
      $region102: #{tpu_custom_call.1} parent=5 // pred_check_branch
        %1129 = sbr.rel (%p1127) target = $region104
      $region103: #{tpu_custom_call.1} parent=5 // pred_region
        %s1130 = ssub.s32 %s33, 2
        // Predicated region
        $region105: #{tpu_custom_call.1} parent=103 // pred_check
          %p1131 = pneg %p308
        $region106: #{tpu_custom_call.1} parent=103 // pred_check_branch
          %1133 = sbr.rel (%p1131) target = $region108
        $region107: #{tpu_custom_call.1} parent=103 // pred_region
          %s1134 = sand.u32 %s293, 1
          %s1135 = scalar_lea.sflag [#allocation4], %s1134
          %s1136 = sand.u32 %s293, 1
          %s1137 = smul.addr %s1136, 8
          %s1138 = scalar_lea.vmem [#allocation14], %s1137
          %1140 = dma.done %s1135, 128
        $region108: #{tpu_custom_call.1} parent=103 // pred_fallthru
          _
        // Predicated region
        $region109: #{tpu_custom_call.1} parent=103 // pred_check
          %p1141 = pneg %p334
        $region110: #{tpu_custom_call.1} parent=103 // pred_check_branch
          %1143 = sbr.rel (%p1141) target = $region112
        $region111: #{tpu_custom_call.1} parent=103 // pred_region
          %s1144 = sand.u32 %s319, 1
          %s1145 = scalar_lea.sflag [#allocation16], %s1144
          %s1146 = sand.u32 %s319, 1
          %s1147 = smul.addr %s1146, 32
          %s1148 = scalar_lea.vmem [#allocation15], %s1147
          %1150 = dma.done %s1145, 512
        $region112: #{tpu_custom_call.1} parent=103 // pred_fallthru
          _
      $region104: #{tpu_custom_call.1} parent=5 // pred_fallthru
        _
    $region6: #{tpu_custom_call.1} parent=1 // loop_footer
      %s37 = sadd.s32 1, %s33
    $region7: #{tpu_custom_call.1} parent=1 // loop_footer_branch
      %32 = sbr.rel target = $region3
    $region8: #{tpu_custom_call.1} parent=1 // loop_exit
      _
    %1151 = vsyncpa [#allocation3], 1
    %s1152 = scalar_lea.sflag [#allocation3], 1
    %1153 = vsyncpa %s1152, 1
    %1154 = vsyncpa [#allocation6], 1
    %s1155 = scalar_lea.sflag [#allocation6], 1
    %1156 = vsyncpa %s1155, 1
    %1157 = vsyncpa [#allocation9], 1
    %1158 = vsyncpa [#allocation12], 1
    %1159 = vsyncpa [#allocation4], 1
    %s1160 = scalar_lea.sflag [#allocation4], 1
    %1161 = vsyncpa %s1160, 1
    %1162 = vsyncpa [#allocation16], 1
    %s1163 = scalar_lea.sflag [#allocation16], 1
    %1164 = vsyncpa %s1163, 1

</llo_original>
